<compile_context>
chip_gen: v5e
topology: v5e:2x2
jax: 0.10.0
libtpu: 0.0.40
codegen_flags: <defaults>
</compile_context>

<pallas_src>
import functools

import jax
import jax.numpy as jnp
import numpy as np
from jax import lax
from jax.experimental import pallas as pl
from jax.experimental.pallas import tpu as pltpu


# ---------------- Kernel A: LayerNorm + fused (m1 | m2/R) projection ----------
def ln_proj_kernel(x_ref, gamma_ref, beta_ref, w_ref, b_ref, m1_ref, m2_ref, *, hidden):
    x = x_ref[...].astype(jnp.float32)                       # (tm, C)
    mu = jnp.mean(x, axis=-1, keepdims=True)
    xc = x - mu
    var = jnp.mean(xc * xc, axis=-1, keepdims=True)
    xn = xc * lax.rsqrt(var + 1e-5)
    xn = xn * gamma_ref[...] + beta_ref[...]                  # (tm, C) f32
    # bf16 MXU operands, f32 accumulation; bias added in f32.
    h = jnp.dot(xn.astype(jnp.bfloat16), w_ref[...],
                preferred_element_type=jnp.float32) + b_ref[...]   # (tm, 2H)
    m1_ref[...] = h[:, :hidden]                               # msa_1
    m2_ref[...] = h[:, hidden:]                               # msa_2 / R


def ln_proj(x, gamma, beta, w12, b12, *, tm):
    M, C = x.shape
    H2 = w12.shape[1]
    H = H2 // 2
    assert M % tm == 0 and (tm % 8 == 0 or tm == M)
    kernel = functools.partial(ln_proj_kernel, hidden=H)
    return pl.pallas_call(
        kernel,
        out_shape=(jax.ShapeDtypeStruct((M, H), jnp.float32),
                   jax.ShapeDtypeStruct((M, H), jnp.float32)),
        grid=(M // tm,),
        in_specs=[
            pl.BlockSpec((tm, C), lambda i: (i, 0)),
            pl.BlockSpec((1, C), lambda i: (0, 0)),
            pl.BlockSpec((1, C), lambda i: (0, 0)),
            pl.BlockSpec((C, H2), lambda i: (0, 0)),
            pl.BlockSpec((1, H2), lambda i: (0, 0)),
        ],
        out_specs=(pl.BlockSpec((tm, H), lambda i: (i, 0)),
                   pl.BlockSpec((tm, H), lambda i: (i, 0))),
        compiler_params=pltpu.CompilerParams(
            dimension_semantics=("parallel",),
            vmem_limit_bytes=48 * 1024 * 1024),
    )(x, gamma, beta, w12, b12)


# ---------------- Fused kernel: outer-product-mean + pair projection ----------
# out[i, j, p] = b3[p] + sum_{r,a,b} (msa_2[r,i,a]/R) * msa_1[r,j,b] * w3[a*H+b, p]
#
# Per grid step (i-tile, j-tile, r-block):
#   Stage 1 (one MXU matmul, K=H, N=H*P lane-dense):
#       z[(i,r), (b,p)] = sum_a m2s[(i,r), a] * w3[a, (b,p)]
#     z is de-interleaved into a bf16 VMEM scratch g[(i,r), b, p] with H static
#     lane-slice stores (equivalent data movement to a reshape, portable ops only).
#   Stage 2 (ti MXU matmuls, K = rb*H deep):
#       out[i, j, :] += m1[j, (r,b)] @ g[i, (r,b), :]
def opm_pair_kernel(m2s_ref, m1_ref, w3_ref, b3_ref, o_ref, g_ref, *, unroll):
    ti, rb, H = m2s_ref.shape
    tj, K = m1_ref.shape                       # K == rb * H
    P = o_ref.shape[-1]

    @pl.when(pl.program_id(2) == 0)
    def _init():
        # bias goes in once; the 1/R mean is already folded into the m2 half.
        o_ref[...] = jnp.broadcast_to(b3_ref[...], o_ref.shape)

    # ---- Stage 1 ----
    x2 = m2s_ref[...].reshape(ti * rb, H).astype(jnp.bfloat16)        # [(i,r), a]
    z = jnp.dot(x2, w3_ref[...], preferred_element_type=jnp.float32)  # [(i,r), (b,p)]
    zb = z.astype(jnp.bfloat16)
    for b in range(H):                     # small fixed unroll, store-only (no MXU work)
        g_ref[:, b, :] = zb[:, b * P:(b + 1) * P]
    # g_ref is fully overwritten every grid step before it is read below.

    # ---- Stage 2 ----
    x1 = m1_ref[...].astype(jnp.bfloat16)                             # (tj, rb*H)

    def body(i, carry):
        start = pl.multiple_of(i * rb, rb)
        g_i = g_ref[pl.ds(start, rb), :, :].reshape(K, P)             # (rb*H, P) bf16
        row = jnp.dot(x1, g_i, preferred_element_type=jnp.float32)    # (tj, P) f32
        o_ref[i] += row
        return carry

    lax.fori_loop(0, ti, body, 0, unroll=unroll)


def fused_opm_pair(m2s, m1, w3_flat, b3, *, ti, tj, rb, unroll=True):
    L, R, H = m2s.shape
    P = w3_flat.shape[1] // H
    assert m1.shape == (L, R * H), m1.shape
    assert L % ti == 0 and L % tj == 0 and R % rb == 0, "tiles must divide L / R"
    assert ti % 8 == 0 or ti == L, "ti must be a multiple of 8 (or L)"
    assert tj % 8 == 0 or tj == L, "tj must be a multiple of 8 (or L)"
    assert (rb == R) or (rb % 8 == 0 and (rb * H) % 128 == 0), (
        "rb must equal R, or satisfy rb % 8 == 0 and (rb*H) % 128 == 0")
    # VMEM per step ~ 2*(ti*rb*H + tj*rb*H)*4 (inputs, dbl-buffered) + ti*rb*H*P*2 (G)
    # + 2*ti*tj*P*4 (resident output).  Keep under ~40-48 MiB on v7x (64 MiB physical);
    # v5e/v6e have 128 MiB so ti/tj/rb can grow further there.
    kernel = functools.partial(opm_pair_kernel, unroll=unroll)
    return pl.pallas_call(
        kernel,
        out_shape=jax.ShapeDtypeStruct((L, L, P), jnp.float32),
        grid=(L // ti, L // tj, R // rb),            # r LAST: output resident across r
        in_specs=[
            pl.BlockSpec((ti, rb, H), lambda i, j, r: (i, r, 0)),     # m2s  [l, r, a]
            pl.BlockSpec((tj, rb * H), lambda i, j, r: (j, r)),       # m1   [l, (r,b)]
            pl.BlockSpec((H, H * P), lambda i, j, r: (0, 0)),         # w3   [a, (b,p)]
            pl.BlockSpec((1, 1, P), lambda i, j, r: (0, 0, 0)),       # b3
        ],
        out_specs=pl.BlockSpec((ti, tj, P), lambda i, j, r: (i, j, 0)),
        scratch_shapes=[pltpu.VMEM((ti * rb, H, P), jnp.bfloat16)],   # G
        compiler_params=pltpu.CompilerParams(
            dimension_semantics=("parallel", "parallel", "arbitrary"),
            vmem_limit_bytes=48 * 1024 * 1024),
    )(m2s, m1, w3_flat, b3)


# ---------------- tile-size defaults --------------------------------------------
def _pick_row_tile(n, cap=1024):
    """Largest multiple-of-8 divisor of n that is <= cap (falls back to n)."""
    if n <= cap:
        return n
    for d in range(cap, 7, -1):
        if n % d == 0 and d % 8 == 0:
            return d
    return n


def _default_ij_tile(L):
    """Prefer >=2 tiles along i/j (v7x has 2 TensorCores) with a /8 tile <= 128."""
    if L % 2 == 0:
        for d in range(min(128, L // 2), 7, -1):
            if L % d == 0 and d % 8 == 0:
                return d
    return L


def _default_rb(R, H):
    """rb = R when the contraction fits; otherwise a layout-legal r block."""
    if R % 8 != 0 or R * H <= 512:
        return R
    step = 8
    while (step * H) % 128 != 0:          # need rb % 8 == 0 and (rb*H) % 128 == 0
        step += 8
    d = max(step, (512 // H) // step * step)
    while d >= step:
        if R % d == 0:
            return d
        d -= step
    return R


# ---------------- Full forward ---------------------------------------------------
def msa_outer_product_mean(msa, params, *, tm=None, ti=None, tj=None, rb=None):
    R, L, C = msa.shape
    H = params["w1"].shape[1]
    P = params["w3"].shape[1]

    # one-time parameter prep (tiny)
    inv_r = jnp.float32(1.0 / R)
    w12 = jnp.concatenate([params["w1"], params["w2"] * inv_r], axis=1).astype(jnp.bfloat16)
    b12 = jnp.concatenate([params["b1"], params["b2"] * inv_r], axis=1)          # f32
    # torch linear_opm_3.weight.T is (H*H, P) with flat row index a*H + b, so its
    # natural (H, H*P) view is exactly w3[a, (b, p)] — no transpose needed.
    w3_flat = params["w3"].reshape(H, H * P).astype(jnp.bfloat16)
    b3 = params["b3"].reshape(1, 1, P)

    M = L * R
    tm = tm if tm is not None else _pick_row_tile(M, 1024)
    ti = ti if ti is not None else _default_ij_tile(L)
    tj = tj if tj is not None else _default_ij_tile(L)
    rb = rb if rb is not None else _default_rb(R, H)

    # (l, r)-ordered rows so the fused kernel's blocks need no in-kernel transposes.
    msa_lr = msa.transpose(1, 0, 2).reshape(M, C)
    m1_flat, m2s_flat = ln_proj(msa_lr, params["gamma"], params["beta"],
                                w12, b12, tm=tm)                     # each (L*R, H) f32
    m1_2d = m1_flat.reshape(L, R * H)        # [l, (r, b)]   -- free reshape
    m2s_3d = m2s_flat.reshape(L, R, H)       # [l, r, a]     -- free reshape

    unroll = True if ti <= 32 else 8
    return fused_opm_pair(m2s_3d, m1_2d, w3_flat, b3,
                          ti=ti, tj=tj, rb=rb, unroll=unroll)


# ---------------- Pure-JAX reference for verification ----------------------------
def reference(msa, p):
    R, L, C = msa.shape
    H = p["w1"].shape[1]
    mu = msa.mean(-1, keepdims=True)
    var = ((msa - mu) ** 2).mean(-1, keepdims=True)
    xn = (msa - mu) / jnp.sqrt(var + 1e-5) * p["gamma"][0] + p["beta"][0]
    m1 = xn @ p["w1"] + p["b1"][0]
    m2 = xn @ p["w2"] + p["b2"][0]
    opm = jnp.einsum("ria,rjb->ijab", m2, m1) / R
    pair = opm.reshape(L, L, H * H) @ p["w3"] + p["b3"][0]
    return pair


if __name__ == "__main__":
    # global_config: msa_dim=32, pair_dim=16 ; msa_outer_product_mean_config: hidden_dim=8
    R, L, C, H, P = 32, 32, 32, 8, 16

    key = jax.random.PRNGKey(0)
    ks = jax.random.split(key, 10)
    msa = jax.random.normal(ks[0], (R, L, C), jnp.float32)

    params = dict(
        gamma=1.0 + 0.1 * jax.random.normal(ks[1], (1, C), jnp.float32),
        beta=0.1 * jax.random.normal(ks[2], (1, C), jnp.float32),
        w1=jax.random.normal(ks[3], (C, H), jnp.float32) / np.sqrt(C),
        b1=0.1 * jax.random.normal(ks[4], (1, H), jnp.float32),
        w2=jax.random.normal(ks[5], (C, H), jnp.float32) / np.sqrt(C),
        b2=0.1 * jax.random.normal(ks[6], (1, H), jnp.float32),
        # torch linear_opm_3.weight has shape (P, H*H); we store its transpose.
        w3=jax.random.normal(ks[7], (H * H, P), jnp.float32) / np.sqrt(H * H),
        b3=0.1 * jax.random.normal(ks[8], (1, P), jnp.float32),
    )

    ref = jax.block_until_ready(reference(msa, params))

    # Run 1: explicit tiles so every grid axis has >1 step (exercises the 2x2 parallel
    # i/j grid, the r accumulation across 2 blocks, and a 4-step ln_proj grid).
    out1 = jax.block_until_ready(
        msa_outer_product_mean(msa, params, tm=256, ti=16, tj=16, rb=16))
    assert out1.shape == (L, L, P), out1.shape
    np.testing.assert_allclose(np.asarray(out1), np.asarray(ref), rtol=2e-2, atol=2e-2)

    # Run 2: library defaults (rb = R, large ln_proj tile, 2x2 i/j grid).
    out2 = jax.block_until_ready(msa_outer_product_mean(msa, params))
    np.testing.assert_allclose(np.asarray(out2), np.asarray(ref), rtol=2e-2, atol=2e-2)

    print("KERNEL_OK")
</pallas_src>

<mosaic_0001>
module attributes {stable_mosaic.version = 11 : i64} {
  func.func @ln_proj_kernel(%arg0: i32, %arg1: memref<256x32xf32, #tpu.memory_space<vmem>>, %arg2: memref<1x32xf32, #tpu.memory_space<vmem>>, %arg3: memref<1x32xf32, #tpu.memory_space<vmem>>, %arg4: memref<32x16xbf16, #tpu.memory_space<vmem>>, %arg5: memref<1x16xf32, #tpu.memory_space<vmem>>, %arg6: memref<256x8xf32, #tpu.memory_space<vmem>>, %arg7: memref<256x8xf32, #tpu.memory_space<vmem>>) attributes {dimension_semantics = [#tpu.dimension_semantics<parallel>], iteration_bounds = array<i64: 4>, scalar_prefetch = 0 : i64, scratch_operands = 0 : i64, tpu.core_type = #tpu.core_type<tc>, window_params = [{transform_indices = @transform_0, window_bounds = array<i64: 256, 32>}, {pipeline_mode = #tpu.pipeline_mode<synchronous>, transform_indices = @transform_1, window_bounds = array<i64: 1, 32>}, {pipeline_mode = #tpu.pipeline_mode<synchronous>, transform_indices = @transform_2, window_bounds = array<i64: 1, 32>}, {pipeline_mode = #tpu.pipeline_mode<synchronous>, transform_indices = @transform_3, window_bounds = array<i64: 32, 16>}, {pipeline_mode = #tpu.pipeline_mode<synchronous>, transform_indices = @transform_4, window_bounds = array<i64: 1, 16>}, {transform_indices = @transform_5, window_bounds = array<i64: 256, 8>}, {transform_indices = @transform_6, window_bounds = array<i64: 256, 8>}]} {
    %c0 = arith.constant 0 : index
    %c0_0 = arith.constant 0 : index
    %0 = vector.load %arg1[%c0, %c0_0] : memref<256x32xf32, #tpu.memory_space<vmem>>, vector<256x32xf32>
    %cst = arith.constant dense<0.000000e+00> : vector<256xf32>
    %1 = vector.multi_reduction <add>, %0, %cst [1] : vector<256x32xf32> to vector<256xf32>
    %2 = vector.shape_cast %1 : vector<256xf32> to vector<256x1xf32>
    %cst_1 = arith.constant 3.200000e+01 : f32
    %3 = vector.broadcast %cst_1 : f32 to vector<256x1xf32>
    %4 = arith.divf %2, %3 : vector<256x1xf32>
    %5 = vector.broadcast %4 : vector<256x1xf32> to vector<256x32xf32>
    %6 = arith.subf %0, %5 : vector<256x32xf32>
    %7 = arith.mulf %6, %6 : vector<256x32xf32>
    %cst_2 = arith.constant dense<0.000000e+00> : vector<256xf32>
    %8 = vector.multi_reduction <add>, %7, %cst_2 [1] : vector<256x32xf32> to vector<256xf32>
    %9 = vector.shape_cast %8 : vector<256xf32> to vector<256x1xf32>
    %cst_3 = arith.constant 3.200000e+01 : f32
    %10 = vector.broadcast %cst_3 : f32 to vector<256x1xf32>
    %11 = arith.divf %9, %10 : vector<256x1xf32>
    %cst_4 = arith.constant 9.99999974E-6 : f32
    %12 = vector.broadcast %cst_4 : f32 to vector<256x1xf32>
    %13 = arith.addf %11, %12 : vector<256x1xf32>
    %14 = math.rsqrt %13 : vector<256x1xf32>
    %15 = vector.broadcast %14 : vector<256x1xf32> to vector<256x32xf32>
    %16 = arith.mulf %6, %15 : vector<256x32xf32>
    %c0_5 = arith.constant 0 : index
    %c0_6 = arith.constant 0 : index
    %17 = vector.load %arg2[%c0_5, %c0_6] : memref<1x32xf32, #tpu.memory_space<vmem>>, vector<1x32xf32>
    %18 = vector.broadcast %17 : vector<1x32xf32> to vector<256x32xf32>
    %19 = arith.mulf %16, %18 : vector<256x32xf32>
    %c0_7 = arith.constant 0 : index
    %c0_8 = arith.constant 0 : index
    %20 = vector.load %arg3[%c0_7, %c0_8] : memref<1x32xf32, #tpu.memory_space<vmem>>, vector<1x32xf32>
    %21 = vector.broadcast %20 : vector<1x32xf32> to vector<256x32xf32>
    %22 = arith.addf %19, %21 : vector<256x32xf32>
    %23 = arith.truncf %22 : vector<256x32xf32> to vector<256x32xbf16>
    %c0_9 = arith.constant 0 : index
    %c0_10 = arith.constant 0 : index
    %24 = vector.load %arg4[%c0_9, %c0_10] : memref<32x16xbf16, #tpu.memory_space<vmem>>, vector<32x16xbf16>
    %cst_11 = arith.constant dense<0.000000e+00> : vector<256x16xf32>
    %25 = tpu.matmul %23, %24, %cst_11 {dimension_numbers = #tpu.dot_dimension_numbers<[1], [0], [0], [1], [0, 0, 1, 1], [], []>} : vector<256x32xbf16>, vector<32x16xbf16>, vector<256x16xf32> -> vector<256x16xf32>
    %c0_12 = arith.constant 0 : index
    %c0_13 = arith.constant 0 : index
    %26 = vector.load %arg5[%c0_12, %c0_13] : memref<1x16xf32, #tpu.memory_space<vmem>>, vector<1x16xf32>
    %27 = vector.broadcast %26 : vector<1x16xf32> to vector<256x16xf32>
    %28 = arith.addf %25, %27 : vector<256x16xf32>
    %29 = vector.extract_strided_slice %28 {offsets = [0, 0], sizes = [256, 8], strides = [1, 1]} : vector<256x16xf32> to vector<256x8xf32>
    %c0_14 = arith.constant 0 : index
    %c0_15 = arith.constant 0 : index
    %30 = vector.load %arg6[%c0_14, %c0_15] : memref<256x8xf32, #tpu.memory_space<vmem>>, vector<256x8xf32>
    tpu.vector_store %arg6[%c0_14, %c0_15], %29 {strides = array<i32>} : memref<256x8xf32, #tpu.memory_space<vmem>>, vector<256x8xf32>,
    %31 = vector.extract_strided_slice %28 {offsets = [0, 8], sizes = [256, 8], strides = [1, 1]} : vector<256x16xf32> to vector<256x8xf32>
    %c0_16 = arith.constant 0 : index
    %c0_17 = arith.constant 0 : index
    %32 = vector.load %arg7[%c0_16, %c0_17] : memref<256x8xf32, #tpu.memory_space<vmem>>, vector<256x8xf32>
    tpu.vector_store %arg7[%c0_16, %c0_17], %31 {strides = array<i32>} : memref<256x8xf32, #tpu.memory_space<vmem>>, vector<256x8xf32>,
    return
  }
  func.func @transform_0(%arg0: i32) -> (i32, i32) {
    %c0_i32 = arith.constant 0 : i32
    %c0_i32_0 = arith.constant 0 : i32
    return %arg0, %c0_i32 : i32, i32
  }
  func.func @transform_1(%arg0: i32) -> (i32, i32) {
    %c0_i32 = arith.constant 0 : i32
    %c0_i32_0 = arith.constant 0 : i32
    %c0_i32_1 = arith.constant 0 : i32
    return %c0_i32, %c0_i32_0 : i32, i32
  }
  func.func @transform_2(%arg0: i32) -> (i32, i32) {
    %c0_i32 = arith.constant 0 : i32
    %c0_i32_0 = arith.constant 0 : i32
    %c0_i32_1 = arith.constant 0 : i32
    return %c0_i32, %c0_i32_0 : i32, i32
  }
  func.func @transform_3(%arg0: i32) -> (i32, i32) {
    %c0_i32 = arith.constant 0 : i32
    %c0_i32_0 = arith.constant 0 : i32
    %c0_i32_1 = arith.constant 0 : i32
    return %c0_i32, %c0_i32_0 : i32, i32
  }
  func.func @transform_4(%arg0: i32) -> (i32, i32) {
    %c0_i32 = arith.constant 0 : i32
    %c0_i32_0 = arith.constant 0 : i32
    %c0_i32_1 = arith.constant 0 : i32
    return %c0_i32, %c0_i32_0 : i32, i32
  }
  func.func @transform_5(%arg0: i32) -> (i32, i32) {
    %c0_i32 = arith.constant 0 : i32
    %c0_i32_0 = arith.constant 0 : i32
    return %arg0, %c0_i32 : i32, i32
  }
  func.func @transform_6(%arg0: i32) -> (i32, i32) {
    %c0_i32 = arith.constant 0 : i32
    %c0_i32_0 = arith.constant 0 : i32
    return %arg0, %c0_i32 : i32, i32
  }
}

</mosaic_0001>

<llo_original>
// kernel: tpu_custom_call.1
$region0: #{tpu_custom_call.1}
  #allocation0 [shape = 'u32[]', space=smem, size = 0x4, offset = 0x4, fixed_abs, tag = 'smem constant byte address 0x4 - core index']
  #allocation1 [shape = 'u32[72,128]{1,0:T(1,128)}', space=vmem, size = 0x9000, scoped, tag = 'internal scratch']
  %s0 = inlined_call_operand.vmem [shape: f32[1024,32], index: 0, kind: input, shape index: {}]
  %s1 = inlined_call_operand.vmem [shape: f32[1,32], index: 1, kind: input, shape index: {}]
  %s2 = inlined_call_operand.vmem [shape: f32[1,32], index: 2, kind: input, shape index: {}]
  %s3 = inlined_call_operand.vmem [shape: bf16[32,16], index: 3, kind: input, shape index: {}]
  %s4 = inlined_call_operand.vmem [shape: f32[1,16], index: 4, kind: input, shape index: {}]
  %s5 = inlined_call_operand.vmem [shape: f32[1024,8], index: 5, kind: output, shape index: {0}]
  %s6 = inlined_call_operand.vmem [shape: f32[1024,8], index: 6, kind: output, shape index: {1}]
  %7 = xla_tuple %s5, %s6
  %s8 = sld [smem:[#allocation0]]
  $region61: #{tpu_custom_call.1} parent=0
    _
  %s10 = ssub.s32 1, %s8
  %s11 = scalar_select 0, %s10, %s8
  loop: start=0, step=1, limit=6
  $region2: #{tpu_custom_call.1} parent=0 // loop_pre_header
    _
  $region3: #{tpu_custom_call.1} parent=0 // loop_header
    %s13 = sphi 0, %s17
    %p14 = scmp.ge.s32.totalorder %s13, 6
    %s23 = sphi 0, %s25
    %s26 = sphi 0, %s23
    %s27 = sphi 0, %s26
    %s43 = sphi 0, %s27
    %s47 = sphi 0, %s47
    %s49 = sphi 0, %s47
    %s50 = sphi 0, %s49
    %s64 = sphi 0, %s50
    %s68 = sphi 0, %s68
    %s70 = sphi 0, %s68
    %s71 = sphi 0, %s70
    %s85 = sphi 0, %s71
    %s89 = sphi 0, %s89
    %s91 = sphi 0, %s89
    %s92 = sphi 0, %s91
    %s106 = sphi 0, %s92
    %s110 = sphi 0, %s110
    %s112 = sphi 0, %s110
    %s113 = sphi 0, %s112
    %s127 = sphi 0, %s113
    %s133 = sphi 0, %s135
    %s136 = sphi 0, %s133
    %s137 = sphi 0, %s136
    %s153 = sphi 0, %s137
    %s159 = sphi 0, %s161
    %s162 = sphi 0, %s159
    %s163 = sphi 0, %s162
    %s179 = sphi 0, %s163
  $region4: #{tpu_custom_call.1} parent=0 // loop_header_branch
    %16 = sbr.rel (%p14) target = $region8
  $region5: #{tpu_custom_call.1} parent=0 // loop_body
    %s18 = ssub.s32 %s13, 1
    %s19 = ssub.s32 %s13, 2
    %s20 = sadd.s32 %s13, 1
    %s21 = ssub.s32 %s13, %s20
    %p22 = scmp.eq.s32.totalorder %s21, 0
    %s24 = sadd.s32 %s23, 1
    %s25 = scalar_select %p22, %s23, %s24
    %p28 = pneg %p22
    %p29 = scmp.eq.s32.totalorder %s13, 3
    %p30 = por %p28, %p29
    %p31 = scmp.ne.s32.totalorder %s23, %s26
    %p32 = scmp.eq.s32.totalorder %s13, 0
    %p33 = por %p31, %p32
    %p34 = scmp.ne.s32.totalorder %s23, %s26
    %p35 = scmp.eq.s32.totalorder %s18, 3
    %p36 = por %p34, %p35
    %p37 = scmp.ne.s32.totalorder %s26, %s27
    %p38 = scmp.eq.s32.totalorder %s18, 0
    %p39 = por %p37, %p38
    %p40 = scmp.ne.s32.totalorder %s26, %s27
    %p41 = scmp.eq.s32.totalorder %s19, 3
    %p42 = por %p40, %p41
    %p44 = scmp.ne.s32.totalorder %s27, %s43
    %p45 = scmp.eq.s32.totalorder %s19, 0
    %p46 = por %p44, %p45
    %s48 = sadd.s32 %s47, 1
    %p51 = scmp.eq.s32.totalorder %s13, 3
    %p52 = scmp.ne.s32.totalorder %s47, %s49
    %p53 = scmp.eq.s32.totalorder %s13, 0
    %p54 = por %p52, %p53
    %p55 = scmp.ne.s32.totalorder %s47, %s49
    %p56 = scmp.eq.s32.totalorder %s18, 3
    %p57 = por %p55, %p56
    %p58 = scmp.ne.s32.totalorder %s49, %s50
    %p59 = scmp.eq.s32.totalorder %s18, 0
    %p60 = por %p58, %p59
    %p61 = scmp.ne.s32.totalorder %s49, %s50
    %p62 = scmp.eq.s32.totalorder %s19, 3
    %p63 = por %p61, %p62
    %p65 = scmp.ne.s32.totalorder %s50, %s64
    %p66 = scmp.eq.s32.totalorder %s19, 0
    %p67 = por %p65, %p66
    %s69 = sadd.s32 %s68, 1
    %p72 = scmp.eq.s32.totalorder %s13, 3
    %p73 = scmp.ne.s32.totalorder %s68, %s70
    %p74 = scmp.eq.s32.totalorder %s13, 0
    %p75 = por %p73, %p74
    %p76 = scmp.ne.s32.totalorder %s68, %s70
    %p77 = scmp.eq.s32.totalorder %s18, 3
    %p78 = por %p76, %p77
    %p79 = scmp.ne.s32.totalorder %s70, %s71
    %p80 = scmp.eq.s32.totalorder %s18, 0
    %p81 = por %p79, %p80
    %p82 = scmp.ne.s32.totalorder %s70, %s71
    %p83 = scmp.eq.s32.totalorder %s19, 3
    %p84 = por %p82, %p83
    %p86 = scmp.ne.s32.totalorder %s71, %s85
    %p87 = scmp.eq.s32.totalorder %s19, 0
    %p88 = por %p86, %p87
    %s90 = sadd.s32 %s89, 1
    %p93 = scmp.eq.s32.totalorder %s13, 3
    %p94 = scmp.ne.s32.totalorder %s89, %s91
    %p95 = scmp.eq.s32.totalorder %s13, 0
    %p96 = por %p94, %p95
    %p97 = scmp.ne.s32.totalorder %s89, %s91
    %p98 = scmp.eq.s32.totalorder %s18, 3
    %p99 = por %p97, %p98
    %p100 = scmp.ne.s32.totalorder %s91, %s92
    %p101 = scmp.eq.s32.totalorder %s18, 0
    %p102 = por %p100, %p101
    %p103 = scmp.ne.s32.totalorder %s91, %s92
    %p104 = scmp.eq.s32.totalorder %s19, 3
    %p105 = por %p103, %p104
    %p107 = scmp.ne.s32.totalorder %s92, %s106
    %p108 = scmp.eq.s32.totalorder %s19, 0
    %p109 = por %p107, %p108
    %s111 = sadd.s32 %s110, 1
    %p114 = scmp.eq.s32.totalorder %s13, 3
    %p115 = scmp.ne.s32.totalorder %s110, %s112
    %p116 = scmp.eq.s32.totalorder %s13, 0
    %p117 = por %p115, %p116
    %p118 = scmp.ne.s32.totalorder %s110, %s112
    %p119 = scmp.eq.s32.totalorder %s18, 3
    %p120 = por %p118, %p119
    %p121 = scmp.ne.s32.totalorder %s112, %s113
    %p122 = scmp.eq.s32.totalorder %s18, 0
    %p123 = por %p121, %p122
    %p124 = scmp.ne.s32.totalorder %s112, %s113
    %p125 = scmp.eq.s32.totalorder %s19, 3
    %p126 = por %p124, %p125
    %p128 = scmp.ne.s32.totalorder %s113, %s127
    %p129 = scmp.eq.s32.totalorder %s19, 0
    %p130 = por %p128, %p129
    %s131 = ssub.s32 %s13, %s20
    %p132 = scmp.eq.s32.totalorder %s131, 0
    %s134 = sadd.s32 %s133, 1
    %s135 = scalar_select %p132, %s133, %s134
    %p138 = pneg %p132
    %p139 = scmp.eq.s32.totalorder %s13, 3
    %p140 = por %p138, %p139
    %p141 = scmp.ne.s32.totalorder %s133, %s136
    %p142 = scmp.eq.s32.totalorder %s13, 0
    %p143 = por %p141, %p142
    %p144 = scmp.ne.s32.totalorder %s133, %s136
    %p145 = scmp.eq.s32.totalorder %s18, 3
    %p146 = por %p144, %p145
    %p147 = scmp.ne.s32.totalorder %s136, %s137
    %p148 = scmp.eq.s32.totalorder %s18, 0
    %p149 = por %p147, %p148
    %p150 = scmp.ne.s32.totalorder %s136, %s137
    %p151 = scmp.eq.s32.totalorder %s19, 3
    %p152 = por %p150, %p151
    %p154 = scmp.ne.s32.totalorder %s137, %s153
    %p155 = scmp.eq.s32.totalorder %s19, 0
    %p156 = por %p154, %p155
    %s157 = ssub.s32 %s13, %s20
    %p158 = scmp.eq.s32.totalorder %s157, 0
    %s160 = sadd.s32 %s159, 1
    %s161 = scalar_select %p158, %s159, %s160
    %p164 = pneg %p158
    %p165 = scmp.eq.s32.totalorder %s13, 3
    %p166 = por %p164, %p165
    %p167 = scmp.ne.s32.totalorder %s159, %s162
    %p168 = scmp.eq.s32.totalorder %s13, 0
    %p169 = por %p167, %p168
    %p170 = scmp.ne.s32.totalorder %s159, %s162
    %p171 = scmp.eq.s32.totalorder %s18, 3
    %p172 = por %p170, %p171
    %p173 = scmp.ne.s32.totalorder %s162, %s163
    %p174 = scmp.eq.s32.totalorder %s18, 0
    %p175 = por %p173, %p174
    %p176 = scmp.ne.s32.totalorder %s162, %s163
    %p177 = scmp.eq.s32.totalorder %s19, 3
    %p178 = por %p176, %p177
    %p180 = scmp.ne.s32.totalorder %s163, %s179
    %p181 = scmp.eq.s32.totalorder %s19, 0
    %p182 = por %p180, %p181
    %p183 = scmp.le.s32.totalorder 1, %s13
    %p184 = scmp.lt.s32.totalorder %s13, 5
    %p185 = pnand %p183, %p184
    %p186 = pneg %p185
    // Predicated region
    $region9: #{tpu_custom_call.1} parent=5 // pred_check
      _
    $region10: #{tpu_custom_call.1} parent=5 // pred_check_branch
      %188 = sbr.rel (%p185) target = $region12
    $region11: #{tpu_custom_call.1} parent=5 // pred_region
      %s189 = ssub.s32 %s13, 1
      // Predicated region
      $region13: #{tpu_custom_call.1} parent=11 // pred_check
        %p190 = pneg %p60
      $region14: #{tpu_custom_call.1} parent=11 // pred_check_branch
        %192 = sbr.rel (%p190) target = $region16
      $region15: #{tpu_custom_call.1} parent=11 // pred_region
        _
      $region16: #{tpu_custom_call.1} parent=11 // pred_fallthru
        _
      // Predicated region
      $region17: #{tpu_custom_call.1} parent=11 // pred_check
        %p193 = pneg %p81
      $region18: #{tpu_custom_call.1} parent=11 // pred_check_branch
        %195 = sbr.rel (%p193) target = $region20
      $region19: #{tpu_custom_call.1} parent=11 // pred_region
        _
      $region20: #{tpu_custom_call.1} parent=11 // pred_fallthru
        _
      // Predicated region
      $region21: #{tpu_custom_call.1} parent=11 // pred_check
        %p196 = pneg %p102
      $region22: #{tpu_custom_call.1} parent=11 // pred_check_branch
        %198 = sbr.rel (%p196) target = $region24
      $region23: #{tpu_custom_call.1} parent=11 // pred_region
        _
      $region24: #{tpu_custom_call.1} parent=11 // pred_fallthru
        _
      // Predicated region
      $region25: #{tpu_custom_call.1} parent=11 // pred_check
        %p199 = pneg %p123
      $region26: #{tpu_custom_call.1} parent=11 // pred_check_branch
        %201 = sbr.rel (%p199) target = $region28
      $region27: #{tpu_custom_call.1} parent=11 // pred_region
        _
      $region28: #{tpu_custom_call.1} parent=11 // pred_fallthru
        _
    $region12: #{tpu_custom_call.1} parent=5 // pred_fallthru
      _
    %p202 = scmp.lt.s32.totalorder %s13, 4
    // Predicated region
    $region29: #{tpu_custom_call.1} parent=5 // pred_check
      %p203 = pneg %p202
    $region30: #{tpu_custom_call.1} parent=5 // pred_check_branch
      %205 = sbr.rel (%p203) target = $region32
    $region31: #{tpu_custom_call.1} parent=5 // pred_region
      // Predicated region
      $region33: #{tpu_custom_call.1} parent=31 // pred_check
        %p206 = pneg %p33
      $region34: #{tpu_custom_call.1} parent=31 // pred_check_branch
        %208 = sbr.rel (%p206) target = $region36
      $region35: #{tpu_custom_call.1} parent=31 // pred_region
        %s209 = smul.u32 32, %s13
        %p210 = scmp.lt.s32.totalorder %s209, 127
        %s211 = scalar_select %p210, %s209, 127
        %s212 = smul.addr %s211, 8
        %s213 = scalar_lea.vmem %s0, %s212
        %s214 = smul.u32 32, %s13
      $region36: #{tpu_custom_call.1} parent=31 // pred_fallthru
        _
    $region32: #{tpu_custom_call.1} parent=5 // pred_fallthru
      _
    %p215 = scmp.le.s32.totalorder 1, %s13
    %p216 = scmp.lt.s32.totalorder %s13, 5
    %p217 = pnand %p215, %p216
    %p218 = pneg %p217
    // Predicated region
    $region37: #{tpu_custom_call.1} parent=5 // pred_check
      _
    $region38: #{tpu_custom_call.1} parent=5 // pred_check_branch
      %220 = sbr.rel (%p217) target = $region40
    $region39: #{tpu_custom_call.1} parent=5 // pred_region
      %s221 = ssub.s32 %s13, 1
      %s222 = smul.u32 32, %s18
      %p223 = scmp.lt.s32.totalorder %s222, 127
      %s224 = scalar_select %p223, %s222, 127
      %s225 = smul.addr %s224, 8
      %s226 = scalar_lea.vmem %s0, %s225
      %p227 = pneg %p39
      %p228 = pneg %p36
      %p229 = pneg %p60
      %p230 = pneg %p57
      %p231 = pneg %p81
      %p232 = pneg %p78
      %p233 = pneg %p102
      %p234 = pneg %p99
      %p235 = pneg %p123
      %p236 = pneg %p120
      %p237 = pneg %p149
      %p238 = pneg %p146
      %s239 = smul.u32 32, %s18
      %p240 = scmp.lt.s32.totalorder %s239, 127
      %s241 = scalar_select %p240, %s239, 127
      %s242 = smul.addr %s241, 8
      %s243 = scalar_lea.vmem %s5, %s242
      %p244 = pneg %p175
      %p245 = pneg %p172
      %s246 = smul.u32 32, %s18
      %p247 = scmp.lt.s32.totalorder %s246, 127
      %s248 = scalar_select %p247, %s246, 127
      %s249 = smul.addr %s248, 8
      %s250 = scalar_lea.vmem %s6, %s249
      %s251 = smul.u32 32, %s18
      %p252 = scmp.lt.s32.totalorder %s251, 127
      %s253 = scalar_select %p252, %s251, 127
      %s254 = smul.addr %s253, 8
      %s255 = scalar_lea.vmem %s0, %s254
      %s256 = smul.u32 32, %s18
      %s257 = smul.u32 32, %s18
      %p258 = scmp.lt.s32.totalorder %s257, 127
      %s259 = scalar_select %p258, %s257, 127
      %s260 = smul.addr %s259, 8
      %s261 = scalar_lea.vmem %s5, %s260
      %s262 = smul.u32 32, %s18
      %s263 = smul.u32 32, %s18
      %p264 = scmp.lt.s32.totalorder %s263, 127
      %s265 = scalar_select %p264, %s263, 127
      %s266 = smul.addr %s265, 8
      %s267 = scalar_lea.vmem %s6, %s266
      %s268 = smul.u32 32, %s18
      %v270 = vld [vmem:[%s255] sm:$0xff]
      %v271 = vld [vmem:[%s255 + $0x8] sm:$0xff]
      %v272 = vld [vmem:[%s255 + $0x10] sm:$0xff]
      %v273 = vld [vmem:[%s255 + $0x18] sm:$0xff]
      %v274 = vld [vmem:[%s255 + $0x20] sm:$0xff]
      %v275 = vld [vmem:[%s255 + $0x28] sm:$0xff]
      %v276 = vld [vmem:[%s255 + $0x30] sm:$0xff]
      %v277 = vld [vmem:[%s255 + $0x38] sm:$0xff]
      %v278 = vld [vmem:[%s255 + $0x40] sm:$0xff]
      %v279 = vld [vmem:[%s255 + $0x48] sm:$0xff]
      %v280 = vld [vmem:[%s255 + $0x50] sm:$0xff]
      %v281 = vld [vmem:[%s255 + $0x58] sm:$0xff]
      %v282 = vld [vmem:[%s255 + $0x60] sm:$0xff]
      %v283 = vld [vmem:[%s255 + $0x68] sm:$0xff]
      %v284 = vld [vmem:[%s255 + $0x70] sm:$0xff]
      %v285 = vld [vmem:[%s255 + $0x78] sm:$0xff]
      %v286 = vld [vmem:[%s255 + $0x80] sm:$0xff]
      %v287 = vld [vmem:[%s255 + $0x88] sm:$0xff]
      %v288 = vld [vmem:[%s255 + $0x90] sm:$0xff]
      %v289 = vld [vmem:[%s255 + $0x98] sm:$0xff]
      %v290 = vld [vmem:[%s255 + $0xa0] sm:$0xff]
      %v291 = vld [vmem:[%s255 + $0xa8] sm:$0xff]
      %v292 = vld [vmem:[%s255 + $0xb0] sm:$0xff]
      %v293 = vld [vmem:[%s255 + $0xb8] sm:$0xff]
      %v294 = vld [vmem:[%s255 + $0xc0] sm:$0xff]
      %v295 = vld [vmem:[%s255 + $0xc8] sm:$0xff]
      %v296 = vld [vmem:[%s255 + $0xd0] sm:$0xff]
      %v297 = vld [vmem:[%s255 + $0xd8] sm:$0xff]
      %v298 = vld [vmem:[%s255 + $0xe0] sm:$0xff]
      %v299 = vld [vmem:[%s255 + $0xe8] sm:$0xff]
      %v300 = vld [vmem:[%s255 + $0xf0] sm:$0xff]
      %v301 = vld [vmem:[%s255 + $0xf8] sm:$0xff]
      %vm302 = vcmask 261120
      %v303 = vsel %vm302, %v270, 0.0
      %304 = vadd.xlane.f32.xlu0 %v303
      %v305 = vpop.xlane.xlu0 %304
      %v306 = vsel %vm302, %v271, 0.0
      %307 = vadd.xlane.f32.xlu0 %v306
      %v308 = vpop.xlane.xlu0 %307
      %v309 = vsel %vm302, %v272, 0.0
      %310 = vadd.xlane.f32.xlu0 %v309
      %v311 = vpop.xlane.xlu0 %310
      %v312 = vsel %vm302, %v273, 0.0
      %313 = vadd.xlane.f32.xlu0 %v312
      %v314 = vpop.xlane.xlu0 %313
      %v315 = vsel %vm302, %v274, 0.0
      %316 = vadd.xlane.f32.xlu0 %v315
      %v317 = vpop.xlane.xlu0 %316
      %v318 = vsel %vm302, %v275, 0.0
      %319 = vadd.xlane.f32.xlu0 %v318
      %v320 = vpop.xlane.xlu0 %319
      %v321 = vsel %vm302, %v276, 0.0
      %322 = vadd.xlane.f32.xlu0 %v321
      %v323 = vpop.xlane.xlu0 %322
      %v324 = vsel %vm302, %v277, 0.0
      %325 = vadd.xlane.f32.xlu0 %v324
      %v326 = vpop.xlane.xlu0 %325
      %v327 = vsel %vm302, %v278, 0.0
      %328 = vadd.xlane.f32.xlu0 %v327
      %v329 = vpop.xlane.xlu0 %328
      %v330 = vsel %vm302, %v279, 0.0
      %331 = vadd.xlane.f32.xlu0 %v330
      %v332 = vpop.xlane.xlu0 %331
      %v333 = vsel %vm302, %v280, 0.0
      %334 = vadd.xlane.f32.xlu0 %v333
      %v335 = vpop.xlane.xlu0 %334
      %v336 = vsel %vm302, %v281, 0.0
      %337 = vadd.xlane.f32.xlu0 %v336
      %v338 = vpop.xlane.xlu0 %337
      %v339 = vsel %vm302, %v282, 0.0
      %340 = vadd.xlane.f32.xlu0 %v339
      %v341 = vpop.xlane.xlu0 %340
      %v342 = vsel %vm302, %v283, 0.0
      %343 = vadd.xlane.f32.xlu0 %v342
      %v344 = vpop.xlane.xlu0 %343
      %v345 = vsel %vm302, %v284, 0.0
      %346 = vadd.xlane.f32.xlu0 %v345
      %v347 = vpop.xlane.xlu0 %346
      %v348 = vsel %vm302, %v285, 0.0
      %349 = vadd.xlane.f32.xlu0 %v348
      %v350 = vpop.xlane.xlu0 %349
      %v351 = vsel %vm302, %v286, 0.0
      %352 = vadd.xlane.f32.xlu0 %v351
      %v353 = vpop.xlane.xlu0 %352
      %v354 = vsel %vm302, %v287, 0.0
      %355 = vadd.xlane.f32.xlu0 %v354
      %v356 = vpop.xlane.xlu0 %355
      %v357 = vsel %vm302, %v288, 0.0
      %358 = vadd.xlane.f32.xlu0 %v357
      %v359 = vpop.xlane.xlu0 %358
      %v360 = vsel %vm302, %v289, 0.0
      %361 = vadd.xlane.f32.xlu0 %v360
      %v362 = vpop.xlane.xlu0 %361
      %v363 = vsel %vm302, %v290, 0.0
      %364 = vadd.xlane.f32.xlu0 %v363
      %v365 = vpop.xlane.xlu0 %364
      %v366 = vsel %vm302, %v291, 0.0
      %367 = vadd.xlane.f32.xlu0 %v366
      %v368 = vpop.xlane.xlu0 %367
      %v369 = vsel %vm302, %v292, 0.0
      %370 = vadd.xlane.f32.xlu0 %v369
      %v371 = vpop.xlane.xlu0 %370
      %v372 = vsel %vm302, %v293, 0.0
      %373 = vadd.xlane.f32.xlu0 %v372
      %v374 = vpop.xlane.xlu0 %373
      %v375 = vsel %vm302, %v294, 0.0
      %376 = vadd.xlane.f32.xlu0 %v375
      %v377 = vpop.xlane.xlu0 %376
      %v378 = vsel %vm302, %v295, 0.0
      %379 = vadd.xlane.f32.xlu0 %v378
      %v380 = vpop.xlane.xlu0 %379
      %v381 = vsel %vm302, %v296, 0.0
      %382 = vadd.xlane.f32.xlu0 %v381
      %v383 = vpop.xlane.xlu0 %382
      %v384 = vsel %vm302, %v297, 0.0
      %385 = vadd.xlane.f32.xlu0 %v384
      %v386 = vpop.xlane.xlu0 %385
      %v387 = vsel %vm302, %v298, 0.0
      %388 = vadd.xlane.f32.xlu0 %v387
      %v389 = vpop.xlane.xlu0 %388
      %v390 = vsel %vm302, %v299, 0.0
      %391 = vadd.xlane.f32.xlu0 %v390
      %v392 = vpop.xlane.xlu0 %391
      %v393 = vsel %vm302, %v300, 0.0
      %394 = vadd.xlane.f32.xlu0 %v393
      %v395 = vpop.xlane.xlu0 %394
      %v396 = vsel %vm302, %v301, 0.0
      %397 = vadd.xlane.f32.xlu0 %v396
      %v398 = vpop.xlane.xlu0 %397
      %v399 = vrcp.pop 32.0
      %v400 = vmul.f32 32.0, %v399
      %v401 = vsub.f32 1.0, %v400
      %v402 = vmul.f32 %v399, %v401
      %v403 = vadd.f32 %v399, %v402
      %vm404 = vweird.f32 %v399
      %v405 = vsel %vm404, %v399, %v403
      %v406 = vmul.f32 %v305, %v405
      %v407 = vmul.f32 %v308, %v405
      %v408 = vmul.f32 %v311, %v405
      %v409 = vmul.f32 %v314, %v405
      %v410 = vmul.f32 %v317, %v405
      %v411 = vmul.f32 %v320, %v405
      %v412 = vmul.f32 %v323, %v405
      %v413 = vmul.f32 %v326, %v405
      %v414 = vmul.f32 %v329, %v405
      %v415 = vmul.f32 %v332, %v405
      %v416 = vmul.f32 %v335, %v405
      %v417 = vmul.f32 %v338, %v405
      %v418 = vmul.f32 %v341, %v405
      %v419 = vmul.f32 %v344, %v405
      %v420 = vmul.f32 %v347, %v405
      %v421 = vmul.f32 %v350, %v405
      %v422 = vmul.f32 %v353, %v405
      %v423 = vmul.f32 %v356, %v405
      %v424 = vmul.f32 %v359, %v405
      %v425 = vmul.f32 %v362, %v405
      %v426 = vmul.f32 %v365, %v405
      %v427 = vmul.f32 %v368, %v405
      %v428 = vmul.f32 %v371, %v405
      %v429 = vmul.f32 %v374, %v405
      %v430 = vmul.f32 %v377, %v405
      %v431 = vmul.f32 %v380, %v405
      %v432 = vmul.f32 %v383, %v405
      %v433 = vmul.f32 %v386, %v405
      %v434 = vmul.f32 %v389, %v405
      %v435 = vmul.f32 %v392, %v405
      %v436 = vmul.f32 %v395, %v405
      %v437 = vmul.f32 %v398, %v405
      %v438 = vsub.f32 %v270, %v406
      %v439 = vsub.f32 %v271, %v407
      %v440 = vsub.f32 %v272, %v408
      %v441 = vsub.f32 %v273, %v409
      %v442 = vsub.f32 %v274, %v410
      %v443 = vsub.f32 %v275, %v411
      %v444 = vsub.f32 %v276, %v412
      %v445 = vsub.f32 %v277, %v413
      %v446 = vsub.f32 %v278, %v414
      %v447 = vsub.f32 %v279, %v415
      %v448 = vsub.f32 %v280, %v416
      %v449 = vsub.f32 %v281, %v417
      %v450 = vsub.f32 %v282, %v418
      %v451 = vsub.f32 %v283, %v419
      %v452 = vsub.f32 %v284, %v420
      %v453 = vsub.f32 %v285, %v421
      %v454 = vsub.f32 %v286, %v422
      %v455 = vsub.f32 %v287, %v423
      %v456 = vsub.f32 %v288, %v424
      %v457 = vsub.f32 %v289, %v425
      %v458 = vsub.f32 %v290, %v426
      %v459 = vsub.f32 %v291, %v427
      %v460 = vsub.f32 %v292, %v428
      %v461 = vsub.f32 %v293, %v429
      %v462 = vsub.f32 %v294, %v430
      %v463 = vsub.f32 %v295, %v431
      %v464 = vsub.f32 %v296, %v432
      %v465 = vsub.f32 %v297, %v433
      %v466 = vsub.f32 %v298, %v434
      %v467 = vsub.f32 %v299, %v435
      %v468 = vsub.f32 %v300, %v436
      %v469 = vsub.f32 %v301, %v437
      %v470 = vmul.f32 %v438, %v438
      %v471 = vmul.f32 %v439, %v439
      %v472 = vmul.f32 %v440, %v440
      %v473 = vmul.f32 %v441, %v441
      %v474 = vmul.f32 %v442, %v442
      %v475 = vmul.f32 %v443, %v443
      %v476 = vmul.f32 %v444, %v444
      %v477 = vmul.f32 %v445, %v445
      %v478 = vmul.f32 %v446, %v446
      %v479 = vmul.f32 %v447, %v447
      %v480 = vmul.f32 %v448, %v448
      %v481 = vmul.f32 %v449, %v449
      %v482 = vmul.f32 %v450, %v450
      %v483 = vmul.f32 %v451, %v451
      %v484 = vmul.f32 %v452, %v452
      %v485 = vmul.f32 %v453, %v453
      %v486 = vmul.f32 %v454, %v454
      %v487 = vmul.f32 %v455, %v455
      %v488 = vmul.f32 %v456, %v456
      %v489 = vmul.f32 %v457, %v457
      %v490 = vmul.f32 %v458, %v458
      %v491 = vmul.f32 %v459, %v459
      %v492 = vmul.f32 %v460, %v460
      %v493 = vmul.f32 %v461, %v461
      %v494 = vmul.f32 %v462, %v462
      %v495 = vmul.f32 %v463, %v463
      %v496 = vmul.f32 %v464, %v464
      %v497 = vmul.f32 %v465, %v465
      %v498 = vmul.f32 %v466, %v466
      %v499 = vmul.f32 %v467, %v467
      %v500 = vmul.f32 %v468, %v468
      %v501 = vmul.f32 %v469, %v469
      %v502 = vsel %vm302, %v470, 0.0
      %503 = vadd.xlane.f32.xlu0 %v502
      %v504 = vpop.xlane.xlu0 %503
      %v505 = vsel %vm302, %v471, 0.0
      %506 = vadd.xlane.f32.xlu0 %v505
      %v507 = vpop.xlane.xlu0 %506
      %v508 = vsel %vm302, %v472, 0.0
      %509 = vadd.xlane.f32.xlu0 %v508
      %v510 = vpop.xlane.xlu0 %509
      %v511 = vsel %vm302, %v473, 0.0
      %512 = vadd.xlane.f32.xlu0 %v511
      %v513 = vpop.xlane.xlu0 %512
      %v514 = vsel %vm302, %v474, 0.0
      %515 = vadd.xlane.f32.xlu0 %v514
      %v516 = vpop.xlane.xlu0 %515
      %v517 = vsel %vm302, %v475, 0.0
      %518 = vadd.xlane.f32.xlu0 %v517
      %v519 = vpop.xlane.xlu0 %518
      %v520 = vsel %vm302, %v476, 0.0
      %521 = vadd.xlane.f32.xlu0 %v520
      %v522 = vpop.xlane.xlu0 %521
      %v523 = vsel %vm302, %v477, 0.0
      %524 = vadd.xlane.f32.xlu0 %v523
      %v525 = vpop.xlane.xlu0 %524
      %v526 = vsel %vm302, %v478, 0.0
      %527 = vadd.xlane.f32.xlu0 %v526
      %v528 = vpop.xlane.xlu0 %527
      %v529 = vsel %vm302, %v479, 0.0
      %530 = vadd.xlane.f32.xlu0 %v529
      %v531 = vpop.xlane.xlu0 %530
      %v532 = vsel %vm302, %v480, 0.0
      %533 = vadd.xlane.f32.xlu0 %v532
      %v534 = vpop.xlane.xlu0 %533
      %v535 = vsel %vm302, %v481, 0.0
      %536 = vadd.xlane.f32.xlu0 %v535
      %v537 = vpop.xlane.xlu0 %536
      %v538 = vsel %vm302, %v482, 0.0
      %539 = vadd.xlane.f32.xlu0 %v538
      %v540 = vpop.xlane.xlu0 %539
      %v541 = vsel %vm302, %v483, 0.0
      %542 = vadd.xlane.f32.xlu0 %v541
      %v543 = vpop.xlane.xlu0 %542
      %v544 = vsel %vm302, %v484, 0.0
      %545 = vadd.xlane.f32.xlu0 %v544
      %v546 = vpop.xlane.xlu0 %545
      %v547 = vsel %vm302, %v485, 0.0
      %548 = vadd.xlane.f32.xlu0 %v547
      %v549 = vpop.xlane.xlu0 %548
      %v550 = vsel %vm302, %v486, 0.0
      %551 = vadd.xlane.f32.xlu0 %v550
      %v552 = vpop.xlane.xlu0 %551
      %v553 = vsel %vm302, %v487, 0.0
      %554 = vadd.xlane.f32.xlu0 %v553
      %v555 = vpop.xlane.xlu0 %554
      %v556 = vsel %vm302, %v488, 0.0
      %557 = vadd.xlane.f32.xlu0 %v556
      %v558 = vpop.xlane.xlu0 %557
      %v559 = vsel %vm302, %v489, 0.0
      %560 = vadd.xlane.f32.xlu0 %v559
      %v561 = vpop.xlane.xlu0 %560
      %v562 = vsel %vm302, %v490, 0.0
      %563 = vadd.xlane.f32.xlu0 %v562
      %v564 = vpop.xlane.xlu0 %563
      %v565 = vsel %vm302, %v491, 0.0
      %566 = vadd.xlane.f32.xlu0 %v565
      %v567 = vpop.xlane.xlu0 %566
      %v568 = vsel %vm302, %v492, 0.0
      %569 = vadd.xlane.f32.xlu0 %v568
      %v570 = vpop.xlane.xlu0 %569
      %v571 = vsel %vm302, %v493, 0.0
      %572 = vadd.xlane.f32.xlu0 %v571
      %v573 = vpop.xlane.xlu0 %572
      %v574 = vsel %vm302, %v494, 0.0
      %575 = vadd.xlane.f32.xlu0 %v574
      %v576 = vpop.xlane.xlu0 %575
      %v577 = vsel %vm302, %v495, 0.0
      %578 = vadd.xlane.f32.xlu0 %v577
      %v579 = vpop.xlane.xlu0 %578
      %v580 = vsel %vm302, %v496, 0.0
      %581 = vadd.xlane.f32.xlu0 %v580
      %v582 = vpop.xlane.xlu0 %581
      %v583 = vsel %vm302, %v497, 0.0
      %584 = vadd.xlane.f32.xlu0 %v583
      %v585 = vpop.xlane.xlu0 %584
      %v586 = vsel %vm302, %v498, 0.0
      %587 = vadd.xlane.f32.xlu0 %v586
      %v588 = vpop.xlane.xlu0 %587
      %v589 = vsel %vm302, %v499, 0.0
      %590 = vadd.xlane.f32.xlu0 %v589
      %v591 = vpop.xlane.xlu0 %590
      %v592 = vsel %vm302, %v500, 0.0
      %593 = vadd.xlane.f32.xlu0 %v592
      %v594 = vpop.xlane.xlu0 %593
      %v595 = vsel %vm302, %v501, 0.0
      %596 = vadd.xlane.f32.xlu0 %v595
      %v597 = vpop.xlane.xlu0 %596
      %v598 = vmul.f32 %v504, %v405
      %v599 = vmul.f32 %v507, %v405
      %v600 = vmul.f32 %v510, %v405
      %v601 = vmul.f32 %v513, %v405
      %v602 = vmul.f32 %v516, %v405
      %v603 = vmul.f32 %v519, %v405
      %v604 = vmul.f32 %v522, %v405
      %v605 = vmul.f32 %v525, %v405
      %v606 = vmul.f32 %v528, %v405
      %v607 = vmul.f32 %v531, %v405
      %v608 = vmul.f32 %v534, %v405
      %v609 = vmul.f32 %v537, %v405
      %v610 = vmul.f32 %v540, %v405
      %v611 = vmul.f32 %v543, %v405
      %v612 = vmul.f32 %v546, %v405
      %v613 = vmul.f32 %v549, %v405
      %v614 = vmul.f32 %v552, %v405
      %v615 = vmul.f32 %v555, %v405
      %v616 = vmul.f32 %v558, %v405
      %v617 = vmul.f32 %v561, %v405
      %v618 = vmul.f32 %v564, %v405
      %v619 = vmul.f32 %v567, %v405
      %v620 = vmul.f32 %v570, %v405
      %v621 = vmul.f32 %v573, %v405
      %v622 = vmul.f32 %v576, %v405
      %v623 = vmul.f32 %v579, %v405
      %v624 = vmul.f32 %v582, %v405
      %v625 = vmul.f32 %v585, %v405
      %v626 = vmul.f32 %v588, %v405
      %v627 = vmul.f32 %v591, %v405
      %v628 = vmul.f32 %v594, %v405
      %v629 = vmul.f32 %v597, %v405
      %v630 = vadd.f32 %v598, 1e-05
      %v631 = vadd.f32 %v599, 1e-05
      %v632 = vadd.f32 %v600, 1e-05
      %v633 = vadd.f32 %v601, 1e-05
      %v634 = vadd.f32 %v602, 1e-05
      %v635 = vadd.f32 %v603, 1e-05
      %v636 = vadd.f32 %v604, 1e-05
      %v637 = vadd.f32 %v605, 1e-05
      %v638 = vadd.f32 %v606, 1e-05
      %v639 = vadd.f32 %v607, 1e-05
      %v640 = vadd.f32 %v608, 1e-05
      %v641 = vadd.f32 %v609, 1e-05
      %v642 = vadd.f32 %v610, 1e-05
      %v643 = vadd.f32 %v611, 1e-05
      %v644 = vadd.f32 %v612, 1e-05
      %v645 = vadd.f32 %v613, 1e-05
      %v646 = vadd.f32 %v614, 1e-05
      %v647 = vadd.f32 %v615, 1e-05
      %v648 = vadd.f32 %v616, 1e-05
      %v649 = vadd.f32 %v617, 1e-05
      %v650 = vadd.f32 %v618, 1e-05
      %v651 = vadd.f32 %v619, 1e-05
      %v652 = vadd.f32 %v620, 1e-05
      %v653 = vadd.f32 %v621, 1e-05
      %v654 = vadd.f32 %v622, 1e-05
      %v655 = vadd.f32 %v623, 1e-05
      %v656 = vadd.f32 %v624, 1e-05
      %v657 = vadd.f32 %v625, 1e-05
      %v658 = vadd.f32 %v626, 1e-05
      %v659 = vadd.f32 %v627, 1e-05
      %v660 = vadd.f32 %v628, 1e-05
      %v661 = vadd.f32 %v629, 1e-05
      %v662 = vrsqrt.pop %v630
      %v663 = vmul.f32 %v662, %v630
      %v664 = vmul.f32 %v663, %v662
      %v665 = vmul.f32 0.5, %v664
      %v666 = vsub.f32 1.5, %v665
      %v667 = vmul.f32 %v662, %v666
      %vm668 = vweird.f32 %v630
      %vm669 = vweird.f32 %v662
      %vm670 = vmor %vm668, %vm669
      %v671 = vsel %vm670, %v662, %v667
      %v672 = vrsqrt.pop %v631
      %v673 = vmul.f32 %v672, %v631
      %v674 = vmul.f32 %v673, %v672
      %v675 = vmul.f32 0.5, %v674
      %v676 = vsub.f32 1.5, %v675
      %v677 = vmul.f32 %v672, %v676
      %vm678 = vweird.f32 %v631
      %vm679 = vweird.f32 %v672
      %vm680 = vmor %vm678, %vm679
      %v681 = vsel %vm680, %v672, %v677
      %v682 = vrsqrt.pop %v632
      %v683 = vmul.f32 %v682, %v632
      %v684 = vmul.f32 %v683, %v682
      %v685 = vmul.f32 0.5, %v684
      %v686 = vsub.f32 1.5, %v685
      %v687 = vmul.f32 %v682, %v686
      %vm688 = vweird.f32 %v632
      %vm689 = vweird.f32 %v682
      %vm690 = vmor %vm688, %vm689
      %v691 = vsel %vm690, %v682, %v687
      %v692 = vrsqrt.pop %v633
      %v693 = vmul.f32 %v692, %v633
      %v694 = vmul.f32 %v693, %v692
      %v695 = vmul.f32 0.5, %v694
      %v696 = vsub.f32 1.5, %v695
      %v697 = vmul.f32 %v692, %v696
      %vm698 = vweird.f32 %v633
      %vm699 = vweird.f32 %v692
      %vm700 = vmor %vm698, %vm699
      %v701 = vsel %vm700, %v692, %v697
      %v702 = vrsqrt.pop %v634
      %v703 = vmul.f32 %v702, %v634
      %v704 = vmul.f32 %v703, %v702
      %v705 = vmul.f32 0.5, %v704
      %v706 = vsub.f32 1.5, %v705
      %v707 = vmul.f32 %v702, %v706
      %vm708 = vweird.f32 %v634
      %vm709 = vweird.f32 %v702
      %vm710 = vmor %vm708, %vm709
      %v711 = vsel %vm710, %v702, %v707
      %v712 = vrsqrt.pop %v635
      %v713 = vmul.f32 %v712, %v635
      %v714 = vmul.f32 %v713, %v712
      %v715 = vmul.f32 0.5, %v714
      %v716 = vsub.f32 1.5, %v715
      %v717 = vmul.f32 %v712, %v716
      %vm718 = vweird.f32 %v635
      %vm719 = vweird.f32 %v712
      %vm720 = vmor %vm718, %vm719
      %v721 = vsel %vm720, %v712, %v717
      %v722 = vrsqrt.pop %v636
      %v723 = vmul.f32 %v722, %v636
      %v724 = vmul.f32 %v723, %v722
      %v725 = vmul.f32 0.5, %v724
      %v726 = vsub.f32 1.5, %v725
      %v727 = vmul.f32 %v722, %v726
      %vm728 = vweird.f32 %v636
      %vm729 = vweird.f32 %v722
      %vm730 = vmor %vm728, %vm729
      %v731 = vsel %vm730, %v722, %v727
      %v732 = vrsqrt.pop %v637
      %v733 = vmul.f32 %v732, %v637
      %v734 = vmul.f32 %v733, %v732
      %v735 = vmul.f32 0.5, %v734
      %v736 = vsub.f32 1.5, %v735
      %v737 = vmul.f32 %v732, %v736
      %vm738 = vweird.f32 %v637
      %vm739 = vweird.f32 %v732
      %vm740 = vmor %vm738, %vm739
      %v741 = vsel %vm740, %v732, %v737
      %v742 = vrsqrt.pop %v638
      %v743 = vmul.f32 %v742, %v638
      %v744 = vmul.f32 %v743, %v742
      %v745 = vmul.f32 0.5, %v744
      %v746 = vsub.f32 1.5, %v745
      %v747 = vmul.f32 %v742, %v746
      %vm748 = vweird.f32 %v638
      %vm749 = vweird.f32 %v742
      %vm750 = vmor %vm748, %vm749
      %v751 = vsel %vm750, %v742, %v747
      %v752 = vrsqrt.pop %v639
      %v753 = vmul.f32 %v752, %v639
      %v754 = vmul.f32 %v753, %v752
      %v755 = vmul.f32 0.5, %v754
      %v756 = vsub.f32 1.5, %v755
      %v757 = vmul.f32 %v752, %v756
      %vm758 = vweird.f32 %v639
      %vm759 = vweird.f32 %v752
      %vm760 = vmor %vm758, %vm759
      %v761 = vsel %vm760, %v752, %v757
      %v762 = vrsqrt.pop %v640
      %v763 = vmul.f32 %v762, %v640
      %v764 = vmul.f32 %v763, %v762
      %v765 = vmul.f32 0.5, %v764
      %v766 = vsub.f32 1.5, %v765
      %v767 = vmul.f32 %v762, %v766
      %vm768 = vweird.f32 %v640
      %vm769 = vweird.f32 %v762
      %vm770 = vmor %vm768, %vm769
      %v771 = vsel %vm770, %v762, %v767
      %v772 = vrsqrt.pop %v641
      %v773 = vmul.f32 %v772, %v641
      %v774 = vmul.f32 %v773, %v772
      %v775 = vmul.f32 0.5, %v774
      %v776 = vsub.f32 1.5, %v775
      %v777 = vmul.f32 %v772, %v776
      %vm778 = vweird.f32 %v641
      %vm779 = vweird.f32 %v772
      %vm780 = vmor %vm778, %vm779
      %v781 = vsel %vm780, %v772, %v777
      %v782 = vrsqrt.pop %v642
      %v783 = vmul.f32 %v782, %v642
      %v784 = vmul.f32 %v783, %v782
      %v785 = vmul.f32 0.5, %v784
      %v786 = vsub.f32 1.5, %v785
      %v787 = vmul.f32 %v782, %v786
      %vm788 = vweird.f32 %v642
      %vm789 = vweird.f32 %v782
      %vm790 = vmor %vm788, %vm789
      %v791 = vsel %vm790, %v782, %v787
      %v792 = vrsqrt.pop %v643
      %v793 = vmul.f32 %v792, %v643
      %v794 = vmul.f32 %v793, %v792
      %v795 = vmul.f32 0.5, %v794
      %v796 = vsub.f32 1.5, %v795
      %v797 = vmul.f32 %v792, %v796
      %vm798 = vweird.f32 %v643
      %vm799 = vweird.f32 %v792
      %vm800 = vmor %vm798, %vm799
      %v801 = vsel %vm800, %v792, %v797
      %v802 = vrsqrt.pop %v644
      %v803 = vmul.f32 %v802, %v644
      %v804 = vmul.f32 %v803, %v802
      %v805 = vmul.f32 0.5, %v804
      %v806 = vsub.f32 1.5, %v805
      %v807 = vmul.f32 %v802, %v806
      %vm808 = vweird.f32 %v644
      %vm809 = vweird.f32 %v802
      %vm810 = vmor %vm808, %vm809
      %v811 = vsel %vm810, %v802, %v807
      %v812 = vrsqrt.pop %v645
      %v813 = vmul.f32 %v812, %v645
      %v814 = vmul.f32 %v813, %v812
      %v815 = vmul.f32 0.5, %v814
      %v816 = vsub.f32 1.5, %v815
      %v817 = vmul.f32 %v812, %v816
      %vm818 = vweird.f32 %v645
      %vm819 = vweird.f32 %v812
      %vm820 = vmor %vm818, %vm819
      %v821 = vsel %vm820, %v812, %v817
      %v822 = vrsqrt.pop %v646
      %v823 = vmul.f32 %v822, %v646
      %v824 = vmul.f32 %v823, %v822
      %v825 = vmul.f32 0.5, %v824
      %v826 = vsub.f32 1.5, %v825
      %v827 = vmul.f32 %v822, %v826
      %vm828 = vweird.f32 %v646
      %vm829 = vweird.f32 %v822
      %vm830 = vmor %vm828, %vm829
      %v831 = vsel %vm830, %v822, %v827
      %v832 = vrsqrt.pop %v647
      %v833 = vmul.f32 %v832, %v647
      %v834 = vmul.f32 %v833, %v832
      %v835 = vmul.f32 0.5, %v834
      %v836 = vsub.f32 1.5, %v835
      %v837 = vmul.f32 %v832, %v836
      %vm838 = vweird.f32 %v647
      %vm839 = vweird.f32 %v832
      %vm840 = vmor %vm838, %vm839
      %v841 = vsel %vm840, %v832, %v837
      %v842 = vrsqrt.pop %v648
      %v843 = vmul.f32 %v842, %v648
      %v844 = vmul.f32 %v843, %v842
      %v845 = vmul.f32 0.5, %v844
      %v846 = vsub.f32 1.5, %v845
      %v847 = vmul.f32 %v842, %v846
      %vm848 = vweird.f32 %v648
      %vm849 = vweird.f32 %v842
      %vm850 = vmor %vm848, %vm849
      %v851 = vsel %vm850, %v842, %v847
      %v852 = vrsqrt.pop %v649
      %v853 = vmul.f32 %v852, %v649
      %v854 = vmul.f32 %v853, %v852
      %v855 = vmul.f32 0.5, %v854
      %v856 = vsub.f32 1.5, %v855
      %v857 = vmul.f32 %v852, %v856
      %vm858 = vweird.f32 %v649
      %vm859 = vweird.f32 %v852
      %vm860 = vmor %vm858, %vm859
      %v861 = vsel %vm860, %v852, %v857
      %v862 = vrsqrt.pop %v650
      %v863 = vmul.f32 %v862, %v650
      %v864 = vmul.f32 %v863, %v862
      %v865 = vmul.f32 0.5, %v864
      %v866 = vsub.f32 1.5, %v865
      %v867 = vmul.f32 %v862, %v866
      %vm868 = vweird.f32 %v650
      %vm869 = vweird.f32 %v862
      %vm870 = vmor %vm868, %vm869
      %v871 = vsel %vm870, %v862, %v867
      %v872 = vrsqrt.pop %v651
      %v873 = vmul.f32 %v872, %v651
      %v874 = vmul.f32 %v873, %v872
      %v875 = vmul.f32 0.5, %v874
      %v876 = vsub.f32 1.5, %v875
      %v877 = vmul.f32 %v872, %v876
      %vm878 = vweird.f32 %v651
      %vm879 = vweird.f32 %v872
      %vm880 = vmor %vm878, %vm879
      %v881 = vsel %vm880, %v872, %v877
      %v882 = vrsqrt.pop %v652
      %v883 = vmul.f32 %v882, %v652
      %v884 = vmul.f32 %v883, %v882
      %v885 = vmul.f32 0.5, %v884
      %v886 = vsub.f32 1.5, %v885
      %v887 = vmul.f32 %v882, %v886
      %vm888 = vweird.f32 %v652
      %vm889 = vweird.f32 %v882
      %vm890 = vmor %vm888, %vm889
      %v891 = vsel %vm890, %v882, %v887
      %v892 = vrsqrt.pop %v653
      %v893 = vmul.f32 %v892, %v653
      %v894 = vmul.f32 %v893, %v892
      %v895 = vmul.f32 0.5, %v894
      %v896 = vsub.f32 1.5, %v895
      %v897 = vmul.f32 %v892, %v896
      %vm898 = vweird.f32 %v653
      %vm899 = vweird.f32 %v892
      %vm900 = vmor %vm898, %vm899
      %v901 = vsel %vm900, %v892, %v897
      %v902 = vrsqrt.pop %v654
      %v903 = vmul.f32 %v902, %v654
      %v904 = vmul.f32 %v903, %v902
      %v905 = vmul.f32 0.5, %v904
      %v906 = vsub.f32 1.5, %v905
      %v907 = vmul.f32 %v902, %v906
      %vm908 = vweird.f32 %v654
      %vm909 = vweird.f32 %v902
      %vm910 = vmor %vm908, %vm909
      %v911 = vsel %vm910, %v902, %v907
      %v912 = vrsqrt.pop %v655
      %v913 = vmul.f32 %v912, %v655
      %v914 = vmul.f32 %v913, %v912
      %v915 = vmul.f32 0.5, %v914
      %v916 = vsub.f32 1.5, %v915
      %v917 = vmul.f32 %v912, %v916
      %vm918 = vweird.f32 %v655
      %vm919 = vweird.f32 %v912
      %vm920 = vmor %vm918, %vm919
      %v921 = vsel %vm920, %v912, %v917
      %v922 = vrsqrt.pop %v656
      %v923 = vmul.f32 %v922, %v656
      %v924 = vmul.f32 %v923, %v922
      %v925 = vmul.f32 0.5, %v924
      %v926 = vsub.f32 1.5, %v925
      %v927 = vmul.f32 %v922, %v926
      %vm928 = vweird.f32 %v656
      %vm929 = vweird.f32 %v922
      %vm930 = vmor %vm928, %vm929
      %v931 = vsel %vm930, %v922, %v927
      %v932 = vrsqrt.pop %v657
      %v933 = vmul.f32 %v932, %v657
      %v934 = vmul.f32 %v933, %v932
      %v935 = vmul.f32 0.5, %v934
      %v936 = vsub.f32 1.5, %v935
      %v937 = vmul.f32 %v932, %v936
      %vm938 = vweird.f32 %v657
      %vm939 = vweird.f32 %v932
      %vm940 = vmor %vm938, %vm939
      %v941 = vsel %vm940, %v932, %v937
      %v942 = vrsqrt.pop %v658
      %v943 = vmul.f32 %v942, %v658
      %v944 = vmul.f32 %v943, %v942
      %v945 = vmul.f32 0.5, %v944
      %v946 = vsub.f32 1.5, %v945
      %v947 = vmul.f32 %v942, %v946
      %vm948 = vweird.f32 %v658
      %vm949 = vweird.f32 %v942
      %vm950 = vmor %vm948, %vm949
      %v951 = vsel %vm950, %v942, %v947
      %v952 = vrsqrt.pop %v659
      %v953 = vmul.f32 %v952, %v659
      %v954 = vmul.f32 %v953, %v952
      %v955 = vmul.f32 0.5, %v954
      %v956 = vsub.f32 1.5, %v955
      %v957 = vmul.f32 %v952, %v956
      %vm958 = vweird.f32 %v659
      %vm959 = vweird.f32 %v952
      %vm960 = vmor %vm958, %vm959
      %v961 = vsel %vm960, %v952, %v957
      %v962 = vrsqrt.pop %v660
      %v963 = vmul.f32 %v962, %v660
      %v964 = vmul.f32 %v963, %v962
      %v965 = vmul.f32 0.5, %v964
      %v966 = vsub.f32 1.5, %v965
      %v967 = vmul.f32 %v962, %v966
      %vm968 = vweird.f32 %v660
      %vm969 = vweird.f32 %v962
      %vm970 = vmor %vm968, %vm969
      %v971 = vsel %vm970, %v962, %v967
      %v972 = vrsqrt.pop %v661
      %v973 = vmul.f32 %v972, %v661
      %v974 = vmul.f32 %v973, %v972
      %v975 = vmul.f32 0.5, %v974
      %v976 = vsub.f32 1.5, %v975
      %v977 = vmul.f32 %v972, %v976
      %vm978 = vweird.f32 %v661
      %vm979 = vweird.f32 %v972
      %vm980 = vmor %vm978, %vm979
      %v981 = vsel %vm980, %v972, %v977
      %v982 = vmul.f32 %v438, %v671
      %v983 = vmul.f32 %v439, %v681
      %v984 = vmul.f32 %v440, %v691
      %v985 = vmul.f32 %v441, %v701
      %v986 = vmul.f32 %v442, %v711
      %v987 = vmul.f32 %v443, %v721
      %v988 = vmul.f32 %v444, %v731
      %v989 = vmul.f32 %v445, %v741
      %v990 = vmul.f32 %v446, %v751
      %v991 = vmul.f32 %v447, %v761
      %v992 = vmul.f32 %v448, %v771
      %v993 = vmul.f32 %v449, %v781
      %v994 = vmul.f32 %v450, %v791
      %v995 = vmul.f32 %v451, %v801
      %v996 = vmul.f32 %v452, %v811
      %v997 = vmul.f32 %v453, %v821
      %v998 = vmul.f32 %v454, %v831
      %v999 = vmul.f32 %v455, %v841
      %v1000 = vmul.f32 %v456, %v851
      %v1001 = vmul.f32 %v457, %v861
      %v1002 = vmul.f32 %v458, %v871
      %v1003 = vmul.f32 %v459, %v881
      %v1004 = vmul.f32 %v460, %v891
      %v1005 = vmul.f32 %v461, %v901
      %v1006 = vmul.f32 %v462, %v911
      %v1007 = vmul.f32 %v463, %v921
      %v1008 = vmul.f32 %v464, %v931
      %v1009 = vmul.f32 %v465, %v941
      %v1010 = vmul.f32 %v466, %v951
      %v1011 = vmul.f32 %v467, %v961
      %v1012 = vmul.f32 %v468, %v971
      %v1013 = vmul.f32 %v469, %v981
      %v1014 = vld [vmem:[%s1] sm:$0x1]
      %v1016 = vperm.slane %v1014, 0
      %v1018 = vmul.f32 %v982, %v1016
      %v1019 = vmul.f32 %v983, %v1016
      %v1020 = vmul.f32 %v984, %v1016
      %v1021 = vmul.f32 %v985, %v1016
      %v1022 = vmul.f32 %v986, %v1016
      %v1023 = vmul.f32 %v987, %v1016
      %v1024 = vmul.f32 %v988, %v1016
      %v1025 = vmul.f32 %v989, %v1016
      %v1026 = vmul.f32 %v990, %v1016
      %v1027 = vmul.f32 %v991, %v1016
      %v1028 = vmul.f32 %v992, %v1016
      %v1029 = vmul.f32 %v993, %v1016
      %v1030 = vmul.f32 %v994, %v1016
      %v1031 = vmul.f32 %v995, %v1016
      %v1032 = vmul.f32 %v996, %v1016
      %v1033 = vmul.f32 %v997, %v1016
      %v1034 = vmul.f32 %v998, %v1016
      %v1035 = vmul.f32 %v999, %v1016
      %v1036 = vmul.f32 %v1000, %v1016
      %v1037 = vmul.f32 %v1001, %v1016
      %v1038 = vmul.f32 %v1002, %v1016
      %v1039 = vmul.f32 %v1003, %v1016
      %v1040 = vmul.f32 %v1004, %v1016
      %v1041 = vmul.f32 %v1005, %v1016
      %v1042 = vmul.f32 %v1006, %v1016
      %v1043 = vmul.f32 %v1007, %v1016
      %v1044 = vmul.f32 %v1008, %v1016
      %v1045 = vmul.f32 %v1009, %v1016
      %v1046 = vmul.f32 %v1010, %v1016
      %v1047 = vmul.f32 %v1011, %v1016
      %v1048 = vmul.f32 %v1012, %v1016
      %v1049 = vmul.f32 %v1013, %v1016
      %v1050 = vld [vmem:[%s2] sm:$0x1]
      %v1052 = vperm.slane %v1050, 0
      %v1054 = vadd.f32 %v1018, %v1052
      %v1055 = vadd.f32 %v1019, %v1052
      %v1056 = vadd.f32 %v1020, %v1052
      %v1057 = vadd.f32 %v1021, %v1052
      %v1058 = vadd.f32 %v1022, %v1052
      %v1059 = vadd.f32 %v1023, %v1052
      %v1060 = vadd.f32 %v1024, %v1052
      %v1061 = vadd.f32 %v1025, %v1052
      %v1062 = vadd.f32 %v1026, %v1052
      %v1063 = vadd.f32 %v1027, %v1052
      %v1064 = vadd.f32 %v1028, %v1052
      %v1065 = vadd.f32 %v1029, %v1052
      %v1066 = vadd.f32 %v1030, %v1052
      %v1067 = vadd.f32 %v1031, %v1052
      %v1068 = vadd.f32 %v1032, %v1052
      %v1069 = vadd.f32 %v1033, %v1052
      %v1070 = vadd.f32 %v1034, %v1052
      %v1071 = vadd.f32 %v1035, %v1052
      %v1072 = vadd.f32 %v1036, %v1052
      %v1073 = vadd.f32 %v1037, %v1052
      %v1074 = vadd.f32 %v1038, %v1052
      %v1075 = vadd.f32 %v1039, %v1052
      %v1076 = vadd.f32 %v1040, %v1052
      %v1077 = vadd.f32 %v1041, %v1052
      %v1078 = vadd.f32 %v1042, %v1052
      %v1079 = vadd.f32 %v1043, %v1052
      %v1080 = vadd.f32 %v1044, %v1052
      %v1081 = vadd.f32 %v1045, %v1052
      %v1082 = vadd.f32 %v1046, %v1052
      %v1083 = vadd.f32 %v1047, %v1052
      %v1084 = vadd.f32 %v1048, %v1052
      %v1085 = vadd.f32 %v1049, %v1052
      %v1086 = vpack.c.bf16 %v1055, %v1054
      %v1087 = vpack.c.bf16 %v1057, %v1056
      %v1088 = vpack.c.bf16 %v1059, %v1058
      %v1089 = vpack.c.bf16 %v1061, %v1060
      %v1090 = vpack.c.bf16 %v1063, %v1062
      %v1091 = vpack.c.bf16 %v1065, %v1064
      %v1092 = vpack.c.bf16 %v1067, %v1066
      %v1093 = vpack.c.bf16 %v1069, %v1068
      %v1094 = vpack.c.bf16 %v1071, %v1070
      %v1095 = vpack.c.bf16 %v1073, %v1072
      %v1096 = vpack.c.bf16 %v1075, %v1074
      %v1097 = vpack.c.bf16 %v1077, %v1076
      %v1098 = vpack.c.bf16 %v1079, %v1078
      %v1099 = vpack.c.bf16 %v1081, %v1080
      %v1100 = vpack.c.bf16 %v1083, %v1082
      %v1101 = vpack.c.bf16 %v1085, %v1084
      %v1102 = vld [vmem:[%s3] sm:$0xf]
      %v1103 = vld [vmem:[%s3 + $0x4] sm:$0xf]
      %v1104 = vld [vmem:[%s3 + $0x8] sm:$0xf]
      %v1105 = vld [vmem:[%s3 + $0xc] sm:$0xf]
      %v1106 = vld [vmem:[%s4] sm:$0x1]
      %v1108 = vperm.slane %v1106, 0
      %v1114 = vunpack.c.l.b16 %v1102
      %v1115 = vunpack.c.l.b16 %v1103
      %v1116 = vunpack.c.l.b16 %v1104
      %v1117 = vunpack.c.l.b16 %v1105
      %v1118 = vpack.c.b16 %v1115, %v1114
      %v1119 = vpack.c.b16 %v1117, %v1116
      %v1123 = vsel %vm302, %v1086, 0
      %v1126 = vsel %vm302, %v1087, 0
      %v1129 = vsel %vm302, %v1088, 0
      %v1132 = vsel %vm302, %v1089, 0
      %v1135 = vsel %vm302, %v1090, 0
      %v1138 = vsel %vm302, %v1091, 0
      %v1141 = vsel %vm302, %v1092, 0
      %v1144 = vsel %vm302, %v1093, 0
      %v1147 = vsel %vm302, %v1094, 0
      %v1150 = vsel %vm302, %v1095, 0
      %v1153 = vsel %vm302, %v1096, 0
      %v1156 = vsel %vm302, %v1097, 0
      %v1159 = vsel %vm302, %v1098, 0
      %v1162 = vsel %vm302, %v1099, 0
      %v1165 = vsel %vm302, %v1100, 0
      %v1168 = vsel %vm302, %v1101, 0
      %1170 = vmatpush.bf16.msra.mxu0 0
      %1171 = vmatpush.bf16.msra.mxu0 0
      %1172 = vmatpush.bf16.msra.mxu0 0
      %1173 = vmatpush.bf16.msra.mxu0 0
      %1174 = vmatpush.bf16.msra.mxu0 0
      %1175 = vmatpush.bf16.msra.mxu0 0
      %1176 = vmatpush.bf16.msra.mxu0 %v1119
      %1177 = vmatpush.bf16.msra.mxu0 %v1118
      %1178 = vmatmul.bf16.gmra.mxu0 %v1123
      %v1179 = vpop.f32.mrf.mxu0
      %v1180 = vadd.f32 %v1108, %v1179
      %v1181 = vpop.f32.mrf.mxu0
      %v1182 = vadd.f32 %v1108, %v1181
      %1183 = vmatmul.bf16.gmra.mxu0 %v1126
      %v1184 = vpop.f32.mrf.mxu0
      %v1185 = vadd.f32 %v1108, %v1184
      %v1186 = vpop.f32.mrf.mxu0
      %v1187 = vadd.f32 %v1108, %v1186
      %1188 = vmatmul.bf16.gmra.mxu0 %v1129
      %v1189 = vpop.f32.mrf.mxu0
      %v1190 = vadd.f32 %v1108, %v1189
      %v1191 = vpop.f32.mrf.mxu0
      %v1192 = vadd.f32 %v1108, %v1191
      %1193 = vmatmul.bf16.gmra.mxu0 %v1132
      %v1194 = vpop.f32.mrf.mxu0
      %v1195 = vadd.f32 %v1108, %v1194
      %v1196 = vpop.f32.mrf.mxu0
      %v1197 = vadd.f32 %v1108, %v1196
      %1198 = vmatmul.bf16.gmra.mxu0 %v1135
      %v1199 = vpop.f32.mrf.mxu0
      %v1200 = vadd.f32 %v1108, %v1199
      %v1201 = vpop.f32.mrf.mxu0
      %v1202 = vadd.f32 %v1108, %v1201
      %1203 = vmatmul.bf16.gmra.mxu0 %v1138
      %v1204 = vpop.f32.mrf.mxu0
      %v1205 = vadd.f32 %v1108, %v1204
      %v1206 = vpop.f32.mrf.mxu0
      %v1207 = vadd.f32 %v1108, %v1206
      %1208 = vmatmul.bf16.gmra.mxu0 %v1141
      %v1209 = vpop.f32.mrf.mxu0
      %v1210 = vadd.f32 %v1108, %v1209
      %v1211 = vpop.f32.mrf.mxu0
      %v1212 = vadd.f32 %v1108, %v1211
      %1213 = vmatmul.bf16.gmra.mxu0 %v1144
      %v1214 = vpop.f32.mrf.mxu0
      %v1215 = vadd.f32 %v1108, %v1214
      %v1216 = vpop.f32.mrf.mxu0
      %v1217 = vadd.f32 %v1108, %v1216
      %1218 = vmatmul.bf16.gmra.mxu0 %v1147
      %v1219 = vpop.f32.mrf.mxu0
      %v1220 = vadd.f32 %v1108, %v1219
      %v1221 = vpop.f32.mrf.mxu0
      %v1222 = vadd.f32 %v1108, %v1221
      %1223 = vmatmul.bf16.gmra.mxu0 %v1150
      %v1224 = vpop.f32.mrf.mxu0
      %v1225 = vadd.f32 %v1108, %v1224
      %v1226 = vpop.f32.mrf.mxu0
      %v1227 = vadd.f32 %v1108, %v1226
      %1228 = vmatmul.bf16.gmra.mxu0 %v1153
      %v1229 = vpop.f32.mrf.mxu0
      %v1230 = vadd.f32 %v1108, %v1229
      %v1231 = vpop.f32.mrf.mxu0
      %v1232 = vadd.f32 %v1108, %v1231
      %1233 = vmatmul.bf16.gmra.mxu0 %v1156
      %v1234 = vpop.f32.mrf.mxu0
      %v1235 = vadd.f32 %v1108, %v1234
      %v1236 = vpop.f32.mrf.mxu0
      %v1237 = vadd.f32 %v1108, %v1236
      %1238 = vmatmul.bf16.gmra.mxu0 %v1159
      %v1239 = vpop.f32.mrf.mxu0
      %v1240 = vadd.f32 %v1108, %v1239
      %v1241 = vpop.f32.mrf.mxu0
      %v1242 = vadd.f32 %v1108, %v1241
      %1243 = vmatmul.bf16.gmra.mxu0 %v1162
      %v1244 = vpop.f32.mrf.mxu0
      %v1245 = vadd.f32 %v1108, %v1244
      %v1246 = vpop.f32.mrf.mxu0
      %v1247 = vadd.f32 %v1108, %v1246
      %1248 = vmatmul.bf16.gmra.mxu0 %v1165
      %v1249 = vpop.f32.mrf.mxu0
      %v1250 = vadd.f32 %v1108, %v1249
      %v1251 = vpop.f32.mrf.mxu0
      %v1252 = vadd.f32 %v1108, %v1251
      %1253 = vmatmul.bf16.gmra.mxu0 %v1168
      %v1254 = vpop.f32.mrf.mxu0
      %v1255 = vadd.f32 %v1108, %v1254
      %v1256 = vpop.f32.mrf.mxu0
      %v1257 = vadd.f32 %v1108, %v1256
      %1258 = vdwg.mxu0
      %vm1259 = vcmask 64512
      %1260 = vst.msk [vmem:[%s261] sm:$0xff] %vm1259, %v1180
      %1261 = vst.msk [vmem:[%s261 + $0x8] sm:$0xff] %vm1259, %v1182
      %1262 = vst.msk [vmem:[%s261 + $0x10] sm:$0xff] %vm1259, %v1185
      %1263 = vst.msk [vmem:[%s261 + $0x18] sm:$0xff] %vm1259, %v1187
      %1264 = vst.msk [vmem:[%s261 + $0x20] sm:$0xff] %vm1259, %v1190
      %1265 = vst.msk [vmem:[%s261 + $0x28] sm:$0xff] %vm1259, %v1192
      %1266 = vst.msk [vmem:[%s261 + $0x30] sm:$0xff] %vm1259, %v1195
      %1267 = vst.msk [vmem:[%s261 + $0x38] sm:$0xff] %vm1259, %v1197
      %1268 = vst.msk [vmem:[%s261 + $0x40] sm:$0xff] %vm1259, %v1200
      %1269 = vst.msk [vmem:[%s261 + $0x48] sm:$0xff] %vm1259, %v1202
      %1270 = vst.msk [vmem:[%s261 + $0x50] sm:$0xff] %vm1259, %v1205
      %1271 = vst.msk [vmem:[%s261 + $0x58] sm:$0xff] %vm1259, %v1207
      %1272 = vst.msk [vmem:[%s261 + $0x60] sm:$0xff] %vm1259, %v1210
      %1273 = vst.msk [vmem:[%s261 + $0x68] sm:$0xff] %vm1259, %v1212
      %1274 = vst.msk [vmem:[%s261 + $0x70] sm:$0xff] %vm1259, %v1215
      %1275 = vst.msk [vmem:[%s261 + $0x78] sm:$0xff] %vm1259, %v1217
      %1276 = vst.msk [vmem:[%s261 + $0x80] sm:$0xff] %vm1259, %v1220
      %1277 = vst.msk [vmem:[%s261 + $0x88] sm:$0xff] %vm1259, %v1222
      %1278 = vst.msk [vmem:[%s261 + $0x90] sm:$0xff] %vm1259, %v1225
      %1279 = vst.msk [vmem:[%s261 + $0x98] sm:$0xff] %vm1259, %v1227
      %1280 = vst.msk [vmem:[%s261 + $0xa0] sm:$0xff] %vm1259, %v1230
      %1281 = vst.msk [vmem:[%s261 + $0xa8] sm:$0xff] %vm1259, %v1232
      %1282 = vst.msk [vmem:[%s261 + $0xb0] sm:$0xff] %vm1259, %v1235
      %1283 = vst.msk [vmem:[%s261 + $0xb8] sm:$0xff] %vm1259, %v1237
      %1284 = vst.msk [vmem:[%s261 + $0xc0] sm:$0xff] %vm1259, %v1240
      %1285 = vst.msk [vmem:[%s261 + $0xc8] sm:$0xff] %vm1259, %v1242
      %1286 = vst.msk [vmem:[%s261 + $0xd0] sm:$0xff] %vm1259, %v1245
      %1287 = vst.msk [vmem:[%s261 + $0xd8] sm:$0xff] %vm1259, %v1247
      %1288 = vst.msk [vmem:[%s261 + $0xe0] sm:$0xff] %vm1259, %v1250
      %1289 = vst.msk [vmem:[%s261 + $0xe8] sm:$0xff] %vm1259, %v1252
      %1290 = vst.msk [vmem:[%s261 + $0xf0] sm:$0xff] %vm1259, %v1255
      %1291 = vst.msk [vmem:[%s261 + $0xf8] sm:$0xff] %vm1259, %v1257
      %1324 = vrot.lane.b32.xlu0 %v1180, 120
      %v1325 = vpop.permute.xlu0 %1324
      %1326 = vrot.lane.b32.xlu0 %v1182, 120
      %v1327 = vpop.permute.xlu0 %1326
      %1328 = vrot.lane.b32.xlu0 %v1185, 120
      %v1329 = vpop.permute.xlu0 %1328
      %1330 = vrot.lane.b32.xlu0 %v1187, 120
      %v1331 = vpop.permute.xlu0 %1330
      %1332 = vrot.lane.b32.xlu0 %v1190, 120
      %v1333 = vpop.permute.xlu0 %1332
      %1334 = vrot.lane.b32.xlu0 %v1192, 120
      %v1335 = vpop.permute.xlu0 %1334
      %1336 = vrot.lane.b32.xlu0 %v1195, 120
      %v1337 = vpop.permute.xlu0 %1336
      %1338 = vrot.lane.b32.xlu0 %v1197, 120
      %v1339 = vpop.permute.xlu0 %1338
      %1340 = vrot.lane.b32.xlu0 %v1200, 120
      %v1341 = vpop.permute.xlu0 %1340
      %1342 = vrot.lane.b32.xlu0 %v1202, 120
      %v1343 = vpop.permute.xlu0 %1342
      %1344 = vrot.lane.b32.xlu0 %v1205, 120
      %v1345 = vpop.permute.xlu0 %1344
      %1346 = vrot.lane.b32.xlu0 %v1207, 120
      %v1347 = vpop.permute.xlu0 %1346
      %1348 = vrot.lane.b32.xlu0 %v1210, 120
      %v1349 = vpop.permute.xlu0 %1348
      %1350 = vrot.lane.b32.xlu0 %v1212, 120
      %v1351 = vpop.permute.xlu0 %1350
      %1352 = vrot.lane.b32.xlu0 %v1215, 120
      %v1353 = vpop.permute.xlu0 %1352
      %1354 = vrot.lane.b32.xlu0 %v1217, 120
      %v1355 = vpop.permute.xlu0 %1354
      %1356 = vrot.lane.b32.xlu0 %v1220, 120
      %v1357 = vpop.permute.xlu0 %1356
      %1358 = vrot.lane.b32.xlu0 %v1222, 120
      %v1359 = vpop.permute.xlu0 %1358
      %1360 = vrot.lane.b32.xlu0 %v1225, 120
      %v1361 = vpop.permute.xlu0 %1360
      %1362 = vrot.lane.b32.xlu0 %v1227, 120
      %v1363 = vpop.permute.xlu0 %1362
      %1364 = vrot.lane.b32.xlu0 %v1230, 120
      %v1365 = vpop.permute.xlu0 %1364
      %1366 = vrot.lane.b32.xlu0 %v1232, 120
      %v1367 = vpop.permute.xlu0 %1366
      %1368 = vrot.lane.b32.xlu0 %v1235, 120
      %v1369 = vpop.permute.xlu0 %1368
      %1370 = vrot.lane.b32.xlu0 %v1237, 120
      %v1371 = vpop.permute.xlu0 %1370
      %1372 = vrot.lane.b32.xlu0 %v1240, 120
      %v1373 = vpop.permute.xlu0 %1372
      %1374 = vrot.lane.b32.xlu0 %v1242, 120
      %v1375 = vpop.permute.xlu0 %1374
      %1376 = vrot.lane.b32.xlu0 %v1245, 120
      %v1377 = vpop.permute.xlu0 %1376
      %1378 = vrot.lane.b32.xlu0 %v1247, 120
      %v1379 = vpop.permute.xlu0 %1378
      %1380 = vrot.lane.b32.xlu0 %v1250, 120
      %v1381 = vpop.permute.xlu0 %1380
      %1382 = vrot.lane.b32.xlu0 %v1252, 120
      %v1383 = vpop.permute.xlu0 %1382
      %1384 = vrot.lane.b32.xlu0 %v1255, 120
      %v1385 = vpop.permute.xlu0 %1384
      %1386 = vrot.lane.b32.xlu0 %v1257, 120
      %v1387 = vpop.permute.xlu0 %1386
      %1420 = vst.msk [vmem:[%s267] sm:$0xff] %vm1259, %v1325
      %1421 = vst.msk [vmem:[%s267 + $0x8] sm:$0xff] %vm1259, %v1327
      %1422 = vst.msk [vmem:[%s267 + $0x10] sm:$0xff] %vm1259, %v1329
      %1423 = vst.msk [vmem:[%s267 + $0x18] sm:$0xff] %vm1259, %v1331
      %1424 = vst.msk [vmem:[%s267 + $0x20] sm:$0xff] %vm1259, %v1333
      %1425 = vst.msk [vmem:[%s267 + $0x28] sm:$0xff] %vm1259, %v1335
      %1426 = vst.msk [vmem:[%s267 + $0x30] sm:$0xff] %vm1259, %v1337
      %1427 = vst.msk [vmem:[%s267 + $0x38] sm:$0xff] %vm1259, %v1339
      %1428 = vst.msk [vmem:[%s267 + $0x40] sm:$0xff] %vm1259, %v1341
      %1429 = vst.msk [vmem:[%s267 + $0x48] sm:$0xff] %vm1259, %v1343
      %1430 = vst.msk [vmem:[%s267 + $0x50] sm:$0xff] %vm1259, %v1345
      %1431 = vst.msk [vmem:[%s267 + $0x58] sm:$0xff] %vm1259, %v1347
      %1432 = vst.msk [vmem:[%s267 + $0x60] sm:$0xff] %vm1259, %v1349
      %1433 = vst.msk [vmem:[%s267 + $0x68] sm:$0xff] %vm1259, %v1351
      %1434 = vst.msk [vmem:[%s267 + $0x70] sm:$0xff] %vm1259, %v1353
      %1435 = vst.msk [vmem:[%s267 + $0x78] sm:$0xff] %vm1259, %v1355
      %1436 = vst.msk [vmem:[%s267 + $0x80] sm:$0xff] %vm1259, %v1357
      %1437 = vst.msk [vmem:[%s267 + $0x88] sm:$0xff] %vm1259, %v1359
      %1438 = vst.msk [vmem:[%s267 + $0x90] sm:$0xff] %vm1259, %v1361
      %1439 = vst.msk [vmem:[%s267 + $0x98] sm:$0xff] %vm1259, %v1363
      %1440 = vst.msk [vmem:[%s267 + $0xa0] sm:$0xff] %vm1259, %v1365
      %1441 = vst.msk [vmem:[%s267 + $0xa8] sm:$0xff] %vm1259, %v1367
      %1442 = vst.msk [vmem:[%s267 + $0xb0] sm:$0xff] %vm1259, %v1369
      %1443 = vst.msk [vmem:[%s267 + $0xb8] sm:$0xff] %vm1259, %v1371
      %1444 = vst.msk [vmem:[%s267 + $0xc0] sm:$0xff] %vm1259, %v1373
      %1445 = vst.msk [vmem:[%s267 + $0xc8] sm:$0xff] %vm1259, %v1375
      %1446 = vst.msk [vmem:[%s267 + $0xd0] sm:$0xff] %vm1259, %v1377
      %1447 = vst.msk [vmem:[%s267 + $0xd8] sm:$0xff] %vm1259, %v1379
      %1448 = vst.msk [vmem:[%s267 + $0xe0] sm:$0xff] %vm1259, %v1381
      %1449 = vst.msk [vmem:[%s267 + $0xe8] sm:$0xff] %vm1259, %v1383
      %1450 = vst.msk [vmem:[%s267 + $0xf0] sm:$0xff] %vm1259, %v1385
      %1451 = vst.msk [vmem:[%s267 + $0xf8] sm:$0xff] %vm1259, %v1387
      %s1452 = smul.u32 32, %s18
      %p1453 = scmp.lt.s32.totalorder %s1452, 127
      %s1454 = scalar_select %p1453, %s1452, 127
      %s1455 = smul.addr %s1454, 8
      %s1456 = scalar_lea.vmem %s5, %s1455
      %s1457 = smul.u32 32, %s18
      %p1458 = scmp.lt.s32.totalorder %s1457, 127
      %s1459 = scalar_select %p1458, %s1457, 127
      %s1460 = smul.addr %s1459, 8
      %s1461 = scalar_lea.vmem %s6, %s1460
      // Predicated region
      $region41: #{tpu_custom_call.1} parent=39 // pred_check
        %p1462 = pneg %p146
      $region42: #{tpu_custom_call.1} parent=39 // pred_check_branch
        %1464 = sbr.rel (%p1462) target = $region44
      $region43: #{tpu_custom_call.1} parent=39 // pred_region
        %s1465 = smul.u32 32, %s18
      $region44: #{tpu_custom_call.1} parent=39 // pred_fallthru
        _
      // Predicated region
      $region45: #{tpu_custom_call.1} parent=39 // pred_check
        %p1466 = pneg %p172
      $region46: #{tpu_custom_call.1} parent=39 // pred_check_branch
        %1468 = sbr.rel (%p1466) target = $region48
      $region47: #{tpu_custom_call.1} parent=39 // pred_region
        %s1469 = smul.u32 32, %s18
      $region48: #{tpu_custom_call.1} parent=39 // pred_fallthru
        _
    $region40: #{tpu_custom_call.1} parent=5 // pred_fallthru
      _
    %p1470 = scmp.le.s32.totalorder 2, %s13
    // Predicated region
    $region49: #{tpu_custom_call.1} parent=5 // pred_check
      %p1471 = pneg %p1470
    $region50: #{tpu_custom_call.1} parent=5 // pred_check_branch
      %1473 = sbr.rel (%p1471) target = $region52
    $region51: #{tpu_custom_call.1} parent=5 // pred_region
      %s1474 = ssub.s32 %s13, 2
      // Predicated region
      $region53: #{tpu_custom_call.1} parent=51 // pred_check
        %p1475 = pneg %p152
      $region54: #{tpu_custom_call.1} parent=51 // pred_check_branch
        %1477 = sbr.rel (%p1475) target = $region56
      $region55: #{tpu_custom_call.1} parent=51 // pred_region
        %s1478 = smul.u32 32, %s19
        %p1479 = scmp.lt.s32.totalorder %s1478, 127
        %s1480 = scalar_select %p1479, %s1478, 127
        %s1481 = smul.addr %s1480, 8
        %s1482 = scalar_lea.vmem %s5, %s1481
      $region56: #{tpu_custom_call.1} parent=51 // pred_fallthru
        _
      // Predicated region
      $region57: #{tpu_custom_call.1} parent=51 // pred_check
        %p1483 = pneg %p178
      $region58: #{tpu_custom_call.1} parent=51 // pred_check_branch
        %1485 = sbr.rel (%p1483) target = $region60
      $region59: #{tpu_custom_call.1} parent=51 // pred_region
        %s1486 = smul.u32 32, %s19
        %p1487 = scmp.lt.s32.totalorder %s1486, 127
        %s1488 = scalar_select %p1487, %s1486, 127
        %s1489 = smul.addr %s1488, 8
        %s1490 = scalar_lea.vmem %s6, %s1489
      $region60: #{tpu_custom_call.1} parent=51 // pred_fallthru
        _
    $region52: #{tpu_custom_call.1} parent=5 // pred_fallthru
      _
  $region6: #{tpu_custom_call.1} parent=0 // loop_footer
    %s17 = sadd.s32 1, %s13
  $region7: #{tpu_custom_call.1} parent=0 // loop_footer_branch
    %12 = sbr.rel target = $region3
  $region8: #{tpu_custom_call.1} parent=0 // loop_exit
    _

</llo_original>
